<compile_context>
chip_gen: v7x
topology: tpu7x:2x2x1
jax: 0.10.0
libtpu: 0.0.40
codegen_flags: <defaults>
</compile_context>

<pallas_src>
import functools

import jax
import jax.numpy as jnp
from jax.experimental import pallas as pl
from jax.experimental.pallas import tpu as pltpu


def _attention_kernel(pq_ref, pm_ref, mem_ref, bias_ref, cat_ref,
                      wloc_ref, wv_ref, ctx_ref, aw_out_ref, *, T, K, block_b):
    wloc = wloc_ref[...]                      # (2K, attn)  fused conv+dense weight (f32)
    wv = wv_ref[...]                          # (1, attn)   f32
    pq = pq_ref[...]                          # (bb, attn)  processed query (f32)

    # ---- Phase 1: K-tap im2col built ONCE for the whole block ----------------
    # cat: (bb, 2, T + 2*pad) f32, time on the lane axis.  Rows are ordered
    # (tap major, channel minor) to match the fused (2K, attn) weight packing.
    cat = cat_ref[...]
    im2col_all = jnp.concatenate(
        [cat[:, :, dk:dk + T] for dk in range(K)], axis=1)        # (bb, 2K, T)

    # ---- Phase 2: per-row energies staged into the (bb, T) output block ------
    # (the output block doubles as VMEM scratch, so no list/concatenate keeps
    #  all rows + temporaries live in vregs until the end of the kernel)
    for b in range(block_b):                  # short static unroll (bb <= 8)
        # loc[t, a] = sum_k im2col[k, t] * wloc[k, a]  -- one MXU matmul, M = T.
        loc = jax.lax.dot_general(
            im2col_all[b], wloc, (((0,), (0,)), ((), ())),
            preferred_element_type=jnp.float32)                   # (T, attn)
        s = jnp.tanh(pq[b:b + 1, :] + loc + pm_ref[b].astype(jnp.float32))
        # energies kept lane-dense as (1, T): contract attn of (1,attn)x(T,attn)
        aw_out_ref[b:b + 1, :] = jax.lax.dot_general(
            wv, s, (((1,), (1,)), ((), ())),
            preferred_element_type=jnp.float32)                   # (1, T)

    # ---- Phase 3: softmax batched over the whole (bb, T) block ---------------
    energies = aw_out_ref[...] + bias_ref[...]      # additive mask (0 / -1e30)
    m = jnp.max(energies, axis=-1, keepdims=True)
    p = jnp.exp(energies - m)
    denom = jnp.sum(p, axis=-1, keepdims=True)
    attn = p * pl.reciprocal(denom, approx=True)                  # (bb, T) f32
    aw_out_ref[...] = attn                                        # dense slab store

    # ---- Phase 4: per-row context matmul, stored row-by-row ------------------
    attn_lp = attn.astype(mem_ref.dtype)                          # bf16 for the MXU
    for b in range(block_b):
        ctx_ref[b:b + 1, :] = jnp.dot(
            attn_lp[b:b + 1, :], mem_ref[b],
            preferred_element_type=jnp.float32)                   # (1, E)


def _tpu_topology():
    """Returns (vmem_capacity_bytes_per_core, has_two_tensorcores)."""
    vmem_cap = 128 * 1024 * 1024
    try:
        vmem_cap = int(pltpu.get_tpu_info().vmem_capacity_bytes)
    except Exception:
        pass
    two_tc = False
    try:
        two_tc = "v7" in jax.devices()[0].device_kind.lower()
    except Exception:
        pass
    # v7x-class parts expose 64 MiB VMEM per TensorCore and 2 TCs per chip.
    if vmem_cap <= 64 * 1024 * 1024:
        two_tc = True
    if two_tc:
        vmem_cap = min(vmem_cap, 64 * 1024 * 1024)
    return vmem_cap, two_tc


def _pick_block_b(B, row_bytes, shared_bytes, vmem_budget, two_tc, max_block_b=8):
    """Largest batch block that fits VMEM, preferring sublane-dense shapes
    (multiple of 8 or == B) and, on 2-TensorCore parts, an even step count."""
    def fits(bb):
        # double-buffered input/output blocks per grid step
        return 2 * (bb * row_bytes + shared_bytes) <= vmem_budget

    cap = max(1, max_block_b)
    divisors = [d for d in range(1, min(B, cap) + 1) if B % d == 0]

    def shape_ok(bb):
        return (bb % 8 == 0) or (bb == B) or (two_tc and 2 * bb == B)

    passes = (True, False) if two_tc else (False,)
    for require_even_steps in passes:
        best = 0
        for bb in divisors:
            if not shape_ok(bb) or not fits(bb):
                continue
            if require_even_steps and (B // bb) % 2 != 0:
                continue
            best = max(best, bb)
        if best:
            return best
    # Fallback: largest divisor that fits (accepting sublane padding).
    for bb in sorted(divisors, reverse=True):
        if fits(bb):
            return bb
    return 1


def attention_forward(query, memory, processed_memory, mask,
                      attention_weights, attention_weights_cum, params,
                      max_block_b=8):
    B, T, E = memory.shape
    attn_dim = processed_memory.shape[-1]
    w_conv = params["w_conv"]                                    # (K, 2, n_filters)
    K, _, n_filters = w_conv.shape
    pad = (K - 1) // 2
    Tp = T + 2 * pad
    f32 = jnp.float32

    # ---- XLA-side glue (cheap, fused by XLA) --------------------------------
    pq = jnp.dot(query.astype(f32), params["w_query"].astype(f32))        # (B, attn)
    w_loc = jnp.dot(w_conv.reshape(K * 2, n_filters).astype(f32),
                    params["w_dense"].astype(f32))                        # (2K, attn)
    w_v = params["w_v"].astype(f32)                                       # (1, attn)
    cat = jnp.stack([attention_weights, attention_weights_cum], axis=1)   # (B, 2, T)
    cat_pad = jnp.pad(cat.astype(f32), ((0, 0), (0, 0), (pad, pad)))      # (B, 2, Tp)
    # Additive mask bias: no in-kernel compare/select, no -inf arithmetic.
    # TODO(synk): a fully-masked row yields uniform attention here, whereas
    # PyTorch's softmax over an all -inf row yields NaN; valid inputs never hit this.
    mask_bias = jnp.where(mask, f32(-1e30), f32(0.0))                     # (B, T)
    # PyTorch adds the OLD attention weights to the cumulative sum *before*
    # replacing them with the new softmax weights.
    awc_new = attention_weights_cum + attention_weights

    # bf16 streaming of the two dominant HBM streams (kernel is HBM-bound at
    # real Tacotron shapes); the MXU consumes bf16 directly with f32 accumulate.
    mem_lp = memory.astype(jnp.bfloat16)
    pm_lp = processed_memory.astype(jnp.bfloat16)

    # ---- generation-aware block sizing --------------------------------------
    vmem_cap, two_tc = _tpu_topology()
    vmem_budget = (3 * vmem_cap) // 4          # ~96 MiB on v5e/v6e, ~48 MiB on v7x
    row_bytes = (4 * attn_dim                  # pq            (f32)
                 + 2 * T * attn_dim            # processed_mem (bf16)
                 + 2 * T * E                   # memory        (bf16)
                 + 4 * T                       # mask bias     (f32)
                 + 4 * 2 * Tp                  # padded att-cat(f32)
                 + 4 * E                       # context out   (f32)
                 + 4 * T)                      # attn-weights out (f32)
    shared_bytes = 4 * (2 * K * attn_dim + attn_dim)
    bb = _pick_block_b(B, row_bytes, shared_bytes, vmem_budget, two_tc, max_block_b)

    kernel = functools.partial(_attention_kernel, T=T, K=K, block_b=bb)

    ctx, aw_new = pl.pallas_call(
        kernel,
        grid=(B // bb,),
        in_specs=[
            pl.BlockSpec((bb, attn_dim), lambda i: (i, 0)),        # pq (f32)
            pl.BlockSpec((bb, T, attn_dim), lambda i: (i, 0, 0)),  # processed_memory (bf16)
            pl.BlockSpec((bb, T, E), lambda i: (i, 0, 0)),         # memory (bf16)
            pl.BlockSpec((bb, T), lambda i: (i, 0)),               # mask bias (f32)
            pl.BlockSpec((bb, 2, Tp), lambda i: (i, 0, 0)),        # padded att-cat (f32)
            pl.BlockSpec((2 * K, attn_dim), lambda i: (0, 0)),     # fused loc weight
            pl.BlockSpec((1, attn_dim), lambda i: (0, 0)),         # v
        ],
        out_specs=[
            pl.BlockSpec((bb, E), lambda i: (i, 0)),               # context
            pl.BlockSpec((bb, T), lambda i: (i, 0)),               # new attn weights
        ],
        out_shape=[
            jax.ShapeDtypeStruct((B, E), jnp.float32),
            jax.ShapeDtypeStruct((B, T), jnp.float32),
        ],
        compiler_params=pltpu.CompilerParams(
            dimension_semantics=("parallel",),
            vmem_limit_bytes=int(vmem_budget)),
    )(pq, pm_lp, mem_lp, mask_bias, cat_pad, w_loc, w_v)

    return ctx, aw_new, awc_new


def attention_reference(query, memory, processed_memory, mask, aw, awc, params):
    """Pure-JAX (f32) reference mirroring the PyTorch forward semantics."""
    pq = query @ params["w_query"]                        # (B, attn_dim)
    cat = jnp.stack([aw, awc], axis=1)                    # (B, 2, T)
    w_oik = jnp.transpose(params["w_conv"], (2, 1, 0))    # torch layout (nf, 2, K)
    pad = (w_oik.shape[-1] - 1) // 2
    conv = jax.lax.conv_general_dilated(
        cat, w_oik, window_strides=(1,), padding=[(pad, pad)],
        dimension_numbers=("NCH", "OIH", "NCH"))          # (B, nf, T)
    loc = jnp.einsum("bft,fa->bta", conv, params["w_dense"])
    s = jnp.tanh(pq[:, None, :] + loc + processed_memory)
    energies = jnp.einsum("bta,a->bt", s, params["w_v"][0])
    energies = jnp.where(mask, -jnp.inf, energies)
    attn = jax.nn.softmax(energies, axis=1)
    ctx = jnp.einsum("bt,bte->be", attn, memory)
    return ctx, attn, awc + aw


if __name__ == "__main__":
    B, T = 4, 16
    rnn_dim, embed_dim, attn_dim = 32, 32, 32
    n_filters, ksize = 8, 5

    key = jax.random.PRNGKey(0)
    keys = jax.random.split(key, 8)

    query = jax.random.normal(keys[0], (B, rnn_dim), jnp.float32)
    memory = jax.random.normal(keys[1], (B, T, embed_dim), jnp.float32)
    processed_memory = jax.random.normal(keys[2], (B, T, attn_dim), jnp.float32)
    # Non-trivial previous / cumulative attention weights to exercise LocationLayer.
    aw = jax.nn.softmax(jax.random.normal(keys[3], (B, T), jnp.float32), axis=-1)
    awc = aw
    lengths = jnp.array([13, 16, 9, 11])
    mask = jnp.arange(T)[None, :] >= lengths[:, None]     # True = padded

    # Deterministic synthetic parameters (stored already in kernel-friendly layout).
    params = {
        "w_query": 0.1 * jax.random.normal(keys[4], (rnn_dim, attn_dim), jnp.float32),
        "w_conv": 0.1 * jax.random.normal(keys[5], (ksize, 2, n_filters), jnp.float32),
        "w_dense": 0.1 * jax.random.normal(keys[6], (n_filters, attn_dim), jnp.float32),
        "w_v": 0.1 * jax.random.normal(keys[7], (1, attn_dim), jnp.float32),
    }

    ctx, aw_new, awc_new = attention_forward(
        query, memory, processed_memory, mask, aw, awc, params)
    jax.block_until_ready(ctx)

    ctx_r, aw_r, awc_r = attention_reference(
        query, memory, processed_memory, mask, aw, awc, params)

    # Tolerance accounts for bf16 streaming of memory / processed_memory and
    # the EUP approximate reciprocal in the softmax denominator.
    assert bool(jnp.allclose(ctx, ctx_r, atol=2e-2, rtol=2e-2)), "context mismatch"
    assert bool(jnp.allclose(aw_new, aw_r, atol=2e-2, rtol=2e-2)), "attn weights mismatch"
    assert bool(jnp.allclose(awc_new, awc_r, atol=1e-5, rtol=1e-5)), "cum weights mismatch"

    print("KERNEL_OK")
</pallas_src>

<mosaic_0001>
module attributes {stable_mosaic.version = 11 : i64} {
  func.func @_attention_kernel(%arg0: i32, %arg1: memref<4x32xf32, #tpu.memory_space<vmem>>, %arg2: memref<4x16x32xbf16, #tpu.memory_space<vmem>>, %arg3: memref<4x16x32xbf16, #tpu.memory_space<vmem>>, %arg4: memref<4x16xf32, #tpu.memory_space<vmem>>, %arg5: memref<4x2x20xf32, #tpu.memory_space<vmem>>, %arg6: memref<10x32xf32, #tpu.memory_space<vmem>>, %arg7: memref<1x32xf32, #tpu.memory_space<vmem>>, %arg8: memref<4x32xf32, #tpu.memory_space<vmem>>, %arg9: memref<4x16xf32, #tpu.memory_space<vmem>>) attributes {dimension_semantics = [#tpu.dimension_semantics<parallel>], iteration_bounds = array<i64: 1>, scalar_prefetch = 0 : i64, scratch_operands = 0 : i64, tpu.core_type = #tpu.core_type<tc>, window_params = [{transform_indices = @transform_0, window_bounds = array<i64: 4, 32>}, {transform_indices = @transform_1, window_bounds = array<i64: 4, 16, 32>}, {transform_indices = @transform_2, window_bounds = array<i64: 4, 16, 32>}, {transform_indices = @transform_3, window_bounds = array<i64: 4, 16>}, {transform_indices = @transform_4, window_bounds = array<i64: 4, 2, 20>}, {pipeline_mode = #tpu.pipeline_mode<synchronous>, transform_indices = @transform_5, window_bounds = array<i64: 10, 32>}, {pipeline_mode = #tpu.pipeline_mode<synchronous>, transform_indices = @transform_6, window_bounds = array<i64: 1, 32>}, {transform_indices = @transform_7, window_bounds = array<i64: 4, 32>}, {transform_indices = @transform_8, window_bounds = array<i64: 4, 16>}]} {
    %c0 = arith.constant 0 : index
    %c0_0 = arith.constant 0 : index
    %0 = vector.load %arg6[%c0, %c0_0] : memref<10x32xf32, #tpu.memory_space<vmem>>, vector<10x32xf32>
    %c0_1 = arith.constant 0 : index
    %c0_2 = arith.constant 0 : index
    %1 = vector.load %arg7[%c0_1, %c0_2] : memref<1x32xf32, #tpu.memory_space<vmem>>, vector<1x32xf32>
    %c0_3 = arith.constant 0 : index
    %c0_4 = arith.constant 0 : index
    %2 = vector.load %arg1[%c0_3, %c0_4] : memref<4x32xf32, #tpu.memory_space<vmem>>, vector<4x32xf32>
    %c0_5 = arith.constant 0 : index
    %c0_6 = arith.constant 0 : index
    %c0_7 = arith.constant 0 : index
    %3 = vector.load %arg5[%c0_5, %c0_6, %c0_7] : memref<4x2x20xf32, #tpu.memory_space<vmem>>, vector<4x2x20xf32>
    %4 = vector.extract_strided_slice %3 {offsets = [0, 0, 0], sizes = [4, 2, 16], strides = [1, 1, 1]} : vector<4x2x20xf32> to vector<4x2x16xf32>
    %5 = vector.extract_strided_slice %3 {offsets = [0, 0, 1], sizes = [4, 2, 16], strides = [1, 1, 1]} : vector<4x2x20xf32> to vector<4x2x16xf32>
    %6 = vector.extract_strided_slice %3 {offsets = [0, 0, 2], sizes = [4, 2, 16], strides = [1, 1, 1]} : vector<4x2x20xf32> to vector<4x2x16xf32>
    %7 = vector.extract_strided_slice %3 {offsets = [0, 0, 3], sizes = [4, 2, 16], strides = [1, 1, 1]} : vector<4x2x20xf32> to vector<4x2x16xf32>
    %8 = vector.extract_strided_slice %3 {offsets = [0, 0, 4], sizes = [4, 2, 16], strides = [1, 1, 1]} : vector<4x2x20xf32> to vector<4x2x16xf32>
    %9 = tpu.concatenate %4, %5, %6, %7, %8 in 1 : vector<4x2x16xf32>, vector<4x2x16xf32>, vector<4x2x16xf32>, vector<4x2x16xf32>, vector<4x2x16xf32> -> vector<4x10x16xf32>
    %10 = vector.extract_strided_slice %9 {offsets = [0, 0, 0], sizes = [1, 10, 16], strides = [1, 1, 1]} : vector<4x10x16xf32> to vector<1x10x16xf32>
    %11 = vector.shape_cast %10 : vector<1x10x16xf32> to vector<10x16xf32>
    %cst = arith.constant dense<0.000000e+00> : vector<16x32xf32>
    %12 = tpu.matmul %11, %0, %cst {dimension_numbers = #tpu.dot_dimension_numbers<[0], [0], [1], [1], [0, 1, 1, 1], [], []>} : vector<10x16xf32>, vector<10x32xf32>, vector<16x32xf32> -> vector<16x32xf32>
    %13 = vector.extract_strided_slice %2 {offsets = [0, 0], sizes = [1, 32], strides = [1, 1]} : vector<4x32xf32> to vector<1x32xf32>
    %14 = vector.broadcast %13 : vector<1x32xf32> to vector<16x32xf32>
    %15 = arith.addf %14, %12 : vector<16x32xf32>
    %c0_8 = arith.constant 0 : index
    %c0_9 = arith.constant 0 : index
    %c0_10 = arith.constant 0 : index
    %16 = vector.load %arg2[%c0_8, %c0_9, %c0_10] : memref<4x16x32xbf16, #tpu.memory_space<vmem>>, vector<1x16x32xbf16>
    %17 = vector.shape_cast %16 : vector<1x16x32xbf16> to vector<16x32xbf16>
    %18 = arith.extf %17 : vector<16x32xbf16> to vector<16x32xf32>
    %19 = arith.addf %15, %18 : vector<16x32xf32>
    %20 = math.tanh %19 : vector<16x32xf32>
    %cst_11 = arith.constant dense<0.000000e+00> : vector<1x16xf32>
    %21 = tpu.matmul %1, %20, %cst_11 {dimension_numbers = #tpu.dot_dimension_numbers<[1], [1], [0], [0], [0, 0, 1, 0], [], []>} : vector<1x32xf32>, vector<16x32xf32>, vector<1x16xf32> -> vector<1x16xf32>
    %c0_12 = arith.constant 0 : index
    %c0_13 = arith.constant 0 : index
    %22 = vector.load %arg9[%c0_12, %c0_13] : memref<4x16xf32, #tpu.memory_space<vmem>>, vector<1x16xf32>
    tpu.vector_store %arg9[%c0_12, %c0_13], %21 {strides = array<i32>} : memref<4x16xf32, #tpu.memory_space<vmem>>, vector<1x16xf32>,
    %23 = vector.extract_strided_slice %9 {offsets = [1, 0, 0], sizes = [1, 10, 16], strides = [1, 1, 1]} : vector<4x10x16xf32> to vector<1x10x16xf32>
    %24 = vector.shape_cast %23 : vector<1x10x16xf32> to vector<10x16xf32>
    %cst_14 = arith.constant dense<0.000000e+00> : vector<16x32xf32>
    %25 = tpu.matmul %24, %0, %cst_14 {dimension_numbers = #tpu.dot_dimension_numbers<[0], [0], [1], [1], [0, 1, 1, 1], [], []>} : vector<10x16xf32>, vector<10x32xf32>, vector<16x32xf32> -> vector<16x32xf32>
    %26 = vector.extract_strided_slice %2 {offsets = [1, 0], sizes = [1, 32], strides = [1, 1]} : vector<4x32xf32> to vector<1x32xf32>
    %27 = vector.broadcast %26 : vector<1x32xf32> to vector<16x32xf32>
    %28 = arith.addf %27, %25 : vector<16x32xf32>
    %c1 = arith.constant 1 : index
    %c0_15 = arith.constant 0 : index
    %c0_16 = arith.constant 0 : index
    %29 = vector.load %arg2[%c1, %c0_15, %c0_16] : memref<4x16x32xbf16, #tpu.memory_space<vmem>>, vector<1x16x32xbf16>
    %30 = vector.shape_cast %29 : vector<1x16x32xbf16> to vector<16x32xbf16>
    %31 = arith.extf %30 : vector<16x32xbf16> to vector<16x32xf32>
    %32 = arith.addf %28, %31 : vector<16x32xf32>
    %33 = math.tanh %32 : vector<16x32xf32>
    %cst_17 = arith.constant dense<0.000000e+00> : vector<1x16xf32>
    %34 = tpu.matmul %1, %33, %cst_17 {dimension_numbers = #tpu.dot_dimension_numbers<[1], [1], [0], [0], [0, 0, 1, 0], [], []>} : vector<1x32xf32>, vector<16x32xf32>, vector<1x16xf32> -> vector<1x16xf32>
    %c1_18 = arith.constant 1 : index
    %c0_19 = arith.constant 0 : index
    %35 = vector.load %arg9[%c1_18, %c0_19] : memref<4x16xf32, #tpu.memory_space<vmem>>, vector<1x16xf32>
    tpu.vector_store %arg9[%c1_18, %c0_19], %34 {strides = array<i32>} : memref<4x16xf32, #tpu.memory_space<vmem>>, vector<1x16xf32>,
    %36 = vector.extract_strided_slice %9 {offsets = [2, 0, 0], sizes = [1, 10, 16], strides = [1, 1, 1]} : vector<4x10x16xf32> to vector<1x10x16xf32>
    %37 = vector.shape_cast %36 : vector<1x10x16xf32> to vector<10x16xf32>
    %cst_20 = arith.constant dense<0.000000e+00> : vector<16x32xf32>
    %38 = tpu.matmul %37, %0, %cst_20 {dimension_numbers = #tpu.dot_dimension_numbers<[0], [0], [1], [1], [0, 1, 1, 1], [], []>} : vector<10x16xf32>, vector<10x32xf32>, vector<16x32xf32> -> vector<16x32xf32>
    %39 = vector.extract_strided_slice %2 {offsets = [2, 0], sizes = [1, 32], strides = [1, 1]} : vector<4x32xf32> to vector<1x32xf32>
    %40 = vector.broadcast %39 : vector<1x32xf32> to vector<16x32xf32>
    %41 = arith.addf %40, %38 : vector<16x32xf32>
    %c2 = arith.constant 2 : index
    %c0_21 = arith.constant 0 : index
    %c0_22 = arith.constant 0 : index
    %42 = vector.load %arg2[%c2, %c0_21, %c0_22] : memref<4x16x32xbf16, #tpu.memory_space<vmem>>, vector<1x16x32xbf16>
    %43 = vector.shape_cast %42 : vector<1x16x32xbf16> to vector<16x32xbf16>
    %44 = arith.extf %43 : vector<16x32xbf16> to vector<16x32xf32>
    %45 = arith.addf %41, %44 : vector<16x32xf32>
    %46 = math.tanh %45 : vector<16x32xf32>
    %cst_23 = arith.constant dense<0.000000e+00> : vector<1x16xf32>
    %47 = tpu.matmul %1, %46, %cst_23 {dimension_numbers = #tpu.dot_dimension_numbers<[1], [1], [0], [0], [0, 0, 1, 0], [], []>} : vector<1x32xf32>, vector<16x32xf32>, vector<1x16xf32> -> vector<1x16xf32>
    %c2_24 = arith.constant 2 : index
    %c0_25 = arith.constant 0 : index
    %48 = vector.load %arg9[%c2_24, %c0_25] : memref<4x16xf32, #tpu.memory_space<vmem>>, vector<1x16xf32>
    tpu.vector_store %arg9[%c2_24, %c0_25], %47 {strides = array<i32>} : memref<4x16xf32, #tpu.memory_space<vmem>>, vector<1x16xf32>,
    %49 = vector.extract_strided_slice %9 {offsets = [3, 0, 0], sizes = [1, 10, 16], strides = [1, 1, 1]} : vector<4x10x16xf32> to vector<1x10x16xf32>
    %50 = vector.shape_cast %49 : vector<1x10x16xf32> to vector<10x16xf32>
    %cst_26 = arith.constant dense<0.000000e+00> : vector<16x32xf32>
    %51 = tpu.matmul %50, %0, %cst_26 {dimension_numbers = #tpu.dot_dimension_numbers<[0], [0], [1], [1], [0, 1, 1, 1], [], []>} : vector<10x16xf32>, vector<10x32xf32>, vector<16x32xf32> -> vector<16x32xf32>
    %52 = vector.extract_strided_slice %2 {offsets = [3, 0], sizes = [1, 32], strides = [1, 1]} : vector<4x32xf32> to vector<1x32xf32>
    %53 = vector.broadcast %52 : vector<1x32xf32> to vector<16x32xf32>
    %54 = arith.addf %53, %51 : vector<16x32xf32>
    %c3 = arith.constant 3 : index
    %c0_27 = arith.constant 0 : index
    %c0_28 = arith.constant 0 : index
    %55 = vector.load %arg2[%c3, %c0_27, %c0_28] : memref<4x16x32xbf16, #tpu.memory_space<vmem>>, vector<1x16x32xbf16>
    %56 = vector.shape_cast %55 : vector<1x16x32xbf16> to vector<16x32xbf16>
    %57 = arith.extf %56 : vector<16x32xbf16> to vector<16x32xf32>
    %58 = arith.addf %54, %57 : vector<16x32xf32>
    %59 = math.tanh %58 : vector<16x32xf32>
    %cst_29 = arith.constant dense<0.000000e+00> : vector<1x16xf32>
    %60 = tpu.matmul %1, %59, %cst_29 {dimension_numbers = #tpu.dot_dimension_numbers<[1], [1], [0], [0], [0, 0, 1, 0], [], []>} : vector<1x32xf32>, vector<16x32xf32>, vector<1x16xf32> -> vector<1x16xf32>
    %c3_30 = arith.constant 3 : index
    %c0_31 = arith.constant 0 : index
    %61 = vector.load %arg9[%c3_30, %c0_31] : memref<4x16xf32, #tpu.memory_space<vmem>>, vector<1x16xf32>
    tpu.vector_store %arg9[%c3_30, %c0_31], %60 {strides = array<i32>} : memref<4x16xf32, #tpu.memory_space<vmem>>, vector<1x16xf32>,
    %c0_32 = arith.constant 0 : index
    %c0_33 = arith.constant 0 : index
    %62 = vector.load %arg9[%c0_32, %c0_33] : memref<4x16xf32, #tpu.memory_space<vmem>>, vector<4x16xf32>
    %c0_34 = arith.constant 0 : index
    %c0_35 = arith.constant 0 : index
    %63 = vector.load %arg4[%c0_34, %c0_35] : memref<4x16xf32, #tpu.memory_space<vmem>>, vector<4x16xf32>
    %64 = arith.addf %62, %63 : vector<4x16xf32>
    %cst_36 = arith.constant dense<0xFF800000> : vector<4xf32>
    %65 = vector.multi_reduction <maximumf>, %64, %cst_36 [1] : vector<4x16xf32> to vector<4xf32>
    %66 = vector.shape_cast %65 : vector<4xf32> to vector<4x1xf32>
    %67 = vector.broadcast %66 : vector<4x1xf32> to vector<4x16xf32>
    %68 = arith.subf %64, %67 : vector<4x16xf32>
    %69 = math.exp %68 : vector<4x16xf32>
    %cst_37 = arith.constant dense<0.000000e+00> : vector<4xf32>
    %70 = vector.multi_reduction <add>, %69, %cst_37 [1] : vector<4x16xf32> to vector<4xf32>
    %71 = vector.shape_cast %70 : vector<4xf32> to vector<4x1xf32>
    %72 = tpu.reciprocal %71 {approx = true} : vector<4x1xf32> -> vector<4x1xf32>
    %73 = vector.broadcast %72 : vector<4x1xf32> to vector<4x16xf32>
    %74 = arith.mulf %69, %73 : vector<4x16xf32>
    %c0_38 = arith.constant 0 : index
    %c0_39 = arith.constant 0 : index
    %75 = vector.load %arg9[%c0_38, %c0_39] : memref<4x16xf32, #tpu.memory_space<vmem>>, vector<4x16xf32>
    tpu.vector_store %arg9[%c0_38, %c0_39], %74 {strides = array<i32>} : memref<4x16xf32, #tpu.memory_space<vmem>>, vector<4x16xf32>,
    %76 = arith.truncf %74 : vector<4x16xf32> to vector<4x16xbf16>
    %77 = vector.extract_strided_slice %76 {offsets = [0, 0], sizes = [1, 16], strides = [1, 1]} : vector<4x16xbf16> to vector<1x16xbf16>
    %c0_40 = arith.constant 0 : index
    %c0_41 = arith.constant 0 : index
    %c0_42 = arith.constant 0 : index
    %78 = vector.load %arg3[%c0_40, %c0_41, %c0_42] : memref<4x16x32xbf16, #tpu.memory_space<vmem>>, vector<1x16x32xbf16>
    %79 = vector.shape_cast %78 : vector<1x16x32xbf16> to vector<16x32xbf16>
    %cst_43 = arith.constant dense<0.000000e+00> : vector<1x32xf32>
    %80 = tpu.matmul %77, %79, %cst_43 {dimension_numbers = #tpu.dot_dimension_numbers<[1], [0], [0], [1], [0, 0, 1, 1], [], []>} : vector<1x16xbf16>, vector<16x32xbf16>, vector<1x32xf32> -> vector<1x32xf32>
    %c0_44 = arith.constant 0 : index
    %c0_45 = arith.constant 0 : index
    %81 = vector.load %arg8[%c0_44, %c0_45] : memref<4x32xf32, #tpu.memory_space<vmem>>, vector<1x32xf32>
    tpu.vector_store %arg8[%c0_44, %c0_45], %80 {strides = array<i32>} : memref<4x32xf32, #tpu.memory_space<vmem>>, vector<1x32xf32>,
    %82 = vector.extract_strided_slice %76 {offsets = [1, 0], sizes = [1, 16], strides = [1, 1]} : vector<4x16xbf16> to vector<1x16xbf16>
    %c1_46 = arith.constant 1 : index
    %c0_47 = arith.constant 0 : index
    %c0_48 = arith.constant 0 : index
    %83 = vector.load %arg3[%c1_46, %c0_47, %c0_48] : memref<4x16x32xbf16, #tpu.memory_space<vmem>>, vector<1x16x32xbf16>
    %84 = vector.shape_cast %83 : vector<1x16x32xbf16> to vector<16x32xbf16>
    %cst_49 = arith.constant dense<0.000000e+00> : vector<1x32xf32>
    %85 = tpu.matmul %82, %84, %cst_49 {dimension_numbers = #tpu.dot_dimension_numbers<[1], [0], [0], [1], [0, 0, 1, 1], [], []>} : vector<1x16xbf16>, vector<16x32xbf16>, vector<1x32xf32> -> vector<1x32xf32>
    %c1_50 = arith.constant 1 : index
    %c0_51 = arith.constant 0 : index
    %86 = vector.load %arg8[%c1_50, %c0_51] : memref<4x32xf32, #tpu.memory_space<vmem>>, vector<1x32xf32>
    tpu.vector_store %arg8[%c1_50, %c0_51], %85 {strides = array<i32>} : memref<4x32xf32, #tpu.memory_space<vmem>>, vector<1x32xf32>,
    %87 = vector.extract_strided_slice %76 {offsets = [2, 0], sizes = [1, 16], strides = [1, 1]} : vector<4x16xbf16> to vector<1x16xbf16>
    %c2_52 = arith.constant 2 : index
    %c0_53 = arith.constant 0 : index
    %c0_54 = arith.constant 0 : index
    %88 = vector.load %arg3[%c2_52, %c0_53, %c0_54] : memref<4x16x32xbf16, #tpu.memory_space<vmem>>, vector<1x16x32xbf16>
    %89 = vector.shape_cast %88 : vector<1x16x32xbf16> to vector<16x32xbf16>
    %cst_55 = arith.constant dense<0.000000e+00> : vector<1x32xf32>
    %90 = tpu.matmul %87, %89, %cst_55 {dimension_numbers = #tpu.dot_dimension_numbers<[1], [0], [0], [1], [0, 0, 1, 1], [], []>} : vector<1x16xbf16>, vector<16x32xbf16>, vector<1x32xf32> -> vector<1x32xf32>
    %c2_56 = arith.constant 2 : index
    %c0_57 = arith.constant 0 : index
    %91 = vector.load %arg8[%c2_56, %c0_57] : memref<4x32xf32, #tpu.memory_space<vmem>>, vector<1x32xf32>
    tpu.vector_store %arg8[%c2_56, %c0_57], %90 {strides = array<i32>} : memref<4x32xf32, #tpu.memory_space<vmem>>, vector<1x32xf32>,
    %92 = vector.extract_strided_slice %76 {offsets = [3, 0], sizes = [1, 16], strides = [1, 1]} : vector<4x16xbf16> to vector<1x16xbf16>
    %c3_58 = arith.constant 3 : index
    %c0_59 = arith.constant 0 : index
    %c0_60 = arith.constant 0 : index
    %93 = vector.load %arg3[%c3_58, %c0_59, %c0_60] : memref<4x16x32xbf16, #tpu.memory_space<vmem>>, vector<1x16x32xbf16>
    %94 = vector.shape_cast %93 : vector<1x16x32xbf16> to vector<16x32xbf16>
    %cst_61 = arith.constant dense<0.000000e+00> : vector<1x32xf32>
    %95 = tpu.matmul %92, %94, %cst_61 {dimension_numbers = #tpu.dot_dimension_numbers<[1], [0], [0], [1], [0, 0, 1, 1], [], []>} : vector<1x16xbf16>, vector<16x32xbf16>, vector<1x32xf32> -> vector<1x32xf32>
    %c3_62 = arith.constant 3 : index
    %c0_63 = arith.constant 0 : index
    %96 = vector.load %arg8[%c3_62, %c0_63] : memref<4x32xf32, #tpu.memory_space<vmem>>, vector<1x32xf32>
    tpu.vector_store %arg8[%c3_62, %c0_63], %95 {strides = array<i32>} : memref<4x32xf32, #tpu.memory_space<vmem>>, vector<1x32xf32>,
    return
  }
  func.func @transform_0(%arg0: i32) -> (i32, i32) {
    %c0_i32 = arith.constant 0 : i32
    %c0_i32_0 = arith.constant 0 : i32
    return %arg0, %c0_i32 : i32, i32
  }
  func.func @transform_1(%arg0: i32) -> (i32, i32, i32) {
    %c0_i32 = arith.constant 0 : i32
    %c0_i32_0 = arith.constant 0 : i32
    %c0_i32_1 = arith.constant 0 : i32
    return %arg0, %c0_i32, %c0_i32_0 : i32, i32, i32
  }
  func.func @transform_2(%arg0: i32) -> (i32, i32, i32) {
    %c0_i32 = arith.constant 0 : i32
    %c0_i32_0 = arith.constant 0 : i32
    %c0_i32_1 = arith.constant 0 : i32
    return %arg0, %c0_i32, %c0_i32_0 : i32, i32, i32
  }
  func.func @transform_3(%arg0: i32) -> (i32, i32) {
    %c0_i32 = arith.constant 0 : i32
    %c0_i32_0 = arith.constant 0 : i32
    return %arg0, %c0_i32 : i32, i32
  }
  func.func @transform_4(%arg0: i32) -> (i32, i32, i32) {
    %c0_i32 = arith.constant 0 : i32
    %c0_i32_0 = arith.constant 0 : i32
    %c0_i32_1 = arith.constant 0 : i32
    return %arg0, %c0_i32, %c0_i32_0 : i32, i32, i32
  }
  func.func @transform_5(%arg0: i32) -> (i32, i32) {
    %c0_i32 = arith.constant 0 : i32
    %c0_i32_0 = arith.constant 0 : i32
    %c0_i32_1 = arith.constant 0 : i32
    return %c0_i32, %c0_i32_0 : i32, i32
  }
  func.func @transform_6(%arg0: i32) -> (i32, i32) {
    %c0_i32 = arith.constant 0 : i32
    %c0_i32_0 = arith.constant 0 : i32
    %c0_i32_1 = arith.constant 0 : i32
    return %c0_i32, %c0_i32_0 : i32, i32
  }
  func.func @transform_7(%arg0: i32) -> (i32, i32) {
    %c0_i32 = arith.constant 0 : i32
    %c0_i32_0 = arith.constant 0 : i32
    return %arg0, %c0_i32 : i32, i32
  }
  func.func @transform_8(%arg0: i32) -> (i32, i32) {
    %c0_i32 = arith.constant 0 : i32
    %c0_i32_0 = arith.constant 0 : i32
    return %arg0, %c0_i32 : i32, i32
  }
}

</mosaic_0001>

<llo_original>
// kernel: tpu_custom_call.1
$region0: #{tpu_custom_call.1}
  #allocation0 [shape = 'u32[]', space=smem, size = 0x4, offset = 0x4, fixed_abs, tag = 'smem constant byte address 0x4 - core index']
  #allocation1 [shape = 'u32[144,128]{1,0:T(1,128)}', space=vmem, size = 0x12000, scoped, tag = 'internal scratch']
  %s0 = inlined_call_operand.hbm [shape: f32[4,32], index: 0, kind: input, shape index: {}]
  %s1 = inlined_call_operand.hbm [shape: bf16[4,16,32], index: 1, kind: input, shape index: {}]
  %s2 = inlined_call_operand.hbm [shape: bf16[4,16,32], index: 2, kind: input, shape index: {}]
  %s3 = inlined_call_operand.hbm [shape: f32[4,16], index: 3, kind: input, shape index: {}]
  %s4 = inlined_call_operand.hbm [shape: f32[4,2,20], index: 4, kind: input, shape index: {}]
  %s5 = inlined_call_operand.hbm [shape: f32[10,32], index: 5, kind: input, shape index: {}]
  %s6 = inlined_call_operand.hbm [shape: f32[1,32], index: 6, kind: input, shape index: {}]
  %s7 = inlined_call_operand.hbm [shape: f32[4,32], index: 7, kind: output, shape index: {0}]
  %s8 = inlined_call_operand.hbm [shape: f32[4,16], index: 8, kind: output, shape index: {1}]
  %9 = xla_tuple %s7, %s8
  %s10 = sld [smem:[#allocation0]]
  $region74: #{tpu_custom_call.1} parent=0
    _
  %s12 = ssub.s32 1, %s10
  %s13 = scalar_select 0, %s12, %s10
  $region1: #{tpu_custom_call.1} parent=0
    #allocation2 [shape = 'u8[2048]{0}', space=vmem, size = 0x800, scoped, tag = 'input window, operand 0, single buffered']
    #allocation3 [shape = 's32[1]{0}', space=sflag, size = 0x4, scoped, tag = 'scoped memory for tpu_custom_call.1']
    #allocation4 [shape = 's32[1]{0}', space=sflag, size = 0x4, scoped, tag = 'scoped memory for tpu_custom_call.1']
    #allocation5 [shape = 'u8[16384]{0}', space=vmem, size = 0x4000, scoped, tag = 'input window, operand 1, single buffered']
    #allocation6 [shape = 's32[1]{0}', space=sflag, size = 0x4, scoped, tag = 'scoped memory for tpu_custom_call.1']
    #allocation7 [shape = 'u8[16384]{0}', space=vmem, size = 0x4000, scoped, tag = 'input window, operand 2, single buffered']
    #allocation8 [shape = 'u8[2048]{0}', space=vmem, size = 0x800, scoped, tag = 'input window, operand 3, single buffered']
    #allocation9 [shape = 's32[1]{0}', space=sflag, size = 0x4, scoped, tag = 'scoped memory for tpu_custom_call.1']
    #allocation10 [shape = 'u8[4096]{0}', space=vmem, size = 0x1000, scoped, tag = 'input window, operand 4, single buffered']
    #allocation11 [shape = 'u8[8192]{0}', space=vmem, size = 0x2000, scoped, tag = 'input window, operand 5, single buffered']
    #allocation12 [shape = 's32[1]{0}', space=sflag, size = 0x4, scoped, tag = 'scoped memory for tpu_custom_call.1']
    #allocation13 [shape = 'u8[512]{0}', space=vmem, size = 0x400, scoped, tag = 'input window, operand 6, single buffered']
    #allocation14 [shape = 'u8[2048]{0}', space=vmem, size = 0x800, scoped, tag = 'output window, operand 0, single buffered']
    #allocation15 [shape = 'u8[2048]{0}', space=vmem, size = 0x800, scoped, tag = 'output window, operand 1, single buffered']
    #allocation16 [shape = 's32[1]{0}', space=sflag, size = 0x4, scoped, tag = 'scoped memory for tpu_custom_call.1']
    %14 = vsyncpa [#allocation3], 0
    %15 = vsyncpa [#allocation6], 0
    %16 = vsyncpa [#allocation9], 0
    %17 = vsyncpa [#allocation12], 0
    %18 = vsyncpa [#allocation4], 0
    %19 = vsyncpa [#allocation16], 0
    // Predicated region
    $region2: #{tpu_custom_call.1} parent=1 // pred_check
      _
    $region3: #{tpu_custom_call.1} parent=1 // pred_check_branch
      %21 = sbr.rel (0) target = $region5
    $region4: #{tpu_custom_call.1} parent=1 // pred_region
      %s23 = ssub.s32 64, 64
      %24 = vsyncadd [#allocation3], %s23
      %s26 = sshll.u32 [#allocation2], 4
      %s27 = int_to_ptr.vmem [resolvable:$true] %s26
      %29 = dma.hbm_to_vmem [thread:$0]  %s0, 64, %s27, [#allocation3]
    $region5: #{tpu_custom_call.1} parent=1 // pred_fallthru
      _
    // Predicated region
    $region6: #{tpu_custom_call.1} parent=1 // pred_check
      _
    $region7: #{tpu_custom_call.1} parent=1 // pred_check_branch
      %31 = sbr.rel (0) target = $region9
    $region8: #{tpu_custom_call.1} parent=1 // pred_region
      %s33 = ssub.s32 512, 512
      %34 = vsyncadd [#allocation6], %s33
      %s35 = sshll.u32 [#allocation5], 4
      %s36 = int_to_ptr.vmem [resolvable:$true] %s35
      %41 = dma.hbm_to_vmem [thread:$0]  %s1, 512, %s36, [#allocation6], 64, 64, 4
    $region9: #{tpu_custom_call.1} parent=1 // pred_fallthru
      _
    // Predicated region
    $region10: #{tpu_custom_call.1} parent=1 // pred_check
      _
    $region11: #{tpu_custom_call.1} parent=1 // pred_check_branch
      %43 = sbr.rel (0) target = $region13
    $region12: #{tpu_custom_call.1} parent=1 // pred_region
      %s45 = ssub.s32 512, 512
      %46 = vsyncadd [#allocation6], %s45
      %s47 = sshll.u32 [#allocation7], 4
      %s48 = int_to_ptr.vmem [resolvable:$true] %s47
      %53 = dma.hbm_to_vmem [thread:$0]  %s2, 512, %s48, [#allocation6], 64, 64, 4
    $region13: #{tpu_custom_call.1} parent=1 // pred_fallthru
      _
    // Predicated region
    $region14: #{tpu_custom_call.1} parent=1 // pred_check
      _
    $region15: #{tpu_custom_call.1} parent=1 // pred_check_branch
      %55 = sbr.rel (0) target = $region17
    $region16: #{tpu_custom_call.1} parent=1 // pred_region
      %s57 = ssub.s32 64, 64
      %58 = vsyncadd [#allocation9], %s57
      %s60 = sshll.u32 [#allocation8], 4
      %s61 = int_to_ptr.vmem [resolvable:$true] %s60
      %63 = dma.hbm_to_vmem [thread:$0]  %s3, 64, %s61, [#allocation9]
    $region17: #{tpu_custom_call.1} parent=1 // pred_fallthru
      _
    // Predicated region
    $region18: #{tpu_custom_call.1} parent=1 // pred_check
      _
    $region19: #{tpu_custom_call.1} parent=1 // pred_check_branch
      %65 = sbr.rel (0) target = $region21
    $region20: #{tpu_custom_call.1} parent=1 // pred_region
      %s67 = ssub.s32 128, 128
      %68 = vsyncadd [#allocation9], %s67
      %s69 = sshll.u32 [#allocation10], 4
      %s70 = int_to_ptr.vmem [resolvable:$true] %s69
      %75 = dma.hbm_to_vmem [thread:$0]  %s4, 128, %s70, [#allocation9], 32, 32, 2
    $region21: #{tpu_custom_call.1} parent=1 // pred_fallthru
      _
    // Predicated region
    $region22: #{tpu_custom_call.1} parent=1 // pred_check
      _
    $region23: #{tpu_custom_call.1} parent=1 // pred_check_branch
      %77 = sbr.rel (0) target = $region25
    $region24: #{tpu_custom_call.1} parent=1 // pred_region
      %s79 = ssub.s32 256, 256
      %80 = vsyncadd [#allocation12], %s79
      %s81 = sshll.u32 [#allocation11], 4
      %s82 = int_to_ptr.vmem [resolvable:$true] %s81
      %87 = dma.hbm_to_vmem [thread:$0]  %s5, 256, %s82, [#allocation12], 128, 128, 8
    $region25: #{tpu_custom_call.1} parent=1 // pred_fallthru
      _
    // Predicated region
    $region26: #{tpu_custom_call.1} parent=1 // pred_check
      _
    $region27: #{tpu_custom_call.1} parent=1 // pred_check_branch
      %89 = sbr.rel (0) target = $region29
    $region28: #{tpu_custom_call.1} parent=1 // pred_region
      %s91 = ssub.s32 16, 16
      %92 = vsyncadd [#allocation12], %s91
      %s94 = sshll.u32 [#allocation13], 4
      %s95 = int_to_ptr.vmem [resolvable:$true] %s94
      %97 = dma.hbm_to_vmem [thread:$0]  %s6, 16, %s95, [#allocation12]
    $region29: #{tpu_custom_call.1} parent=1 // pred_fallthru
      _
    // Predicated region
    $region30: #{tpu_custom_call.1} parent=1 // pred_check
      _
    $region31: #{tpu_custom_call.1} parent=1 // pred_check_branch
      %99 = sbr.rel (0) target = $region33
    $region32: #{tpu_custom_call.1} parent=1 // pred_region
      %100 = dma.done [#allocation3], 64
    $region33: #{tpu_custom_call.1} parent=1 // pred_fallthru
      _
    // Predicated region
    $region34: #{tpu_custom_call.1} parent=1 // pred_check
      _
    $region35: #{tpu_custom_call.1} parent=1 // pred_check_branch
      %102 = sbr.rel (0) target = $region37
    $region36: #{tpu_custom_call.1} parent=1 // pred_region
      %103 = dma.done [#allocation6], 512
    $region37: #{tpu_custom_call.1} parent=1 // pred_fallthru
      _
    // Predicated region
    $region38: #{tpu_custom_call.1} parent=1 // pred_check
      _
    $region39: #{tpu_custom_call.1} parent=1 // pred_check_branch
      %105 = sbr.rel (0) target = $region41
    $region40: #{tpu_custom_call.1} parent=1 // pred_region
      %106 = dma.done [#allocation6], 512
    $region41: #{tpu_custom_call.1} parent=1 // pred_fallthru
      _
    // Predicated region
    $region42: #{tpu_custom_call.1} parent=1 // pred_check
      _
    $region43: #{tpu_custom_call.1} parent=1 // pred_check_branch
      %108 = sbr.rel (0) target = $region45
    $region44: #{tpu_custom_call.1} parent=1 // pred_region
      %109 = dma.done [#allocation9], 64
    $region45: #{tpu_custom_call.1} parent=1 // pred_fallthru
      _
    // Predicated region
    $region46: #{tpu_custom_call.1} parent=1 // pred_check
      _
    $region47: #{tpu_custom_call.1} parent=1 // pred_check_branch
      %111 = sbr.rel (0) target = $region49
    $region48: #{tpu_custom_call.1} parent=1 // pred_region
      %112 = dma.done [#allocation9], 128
    $region49: #{tpu_custom_call.1} parent=1 // pred_fallthru
      _
    // Predicated region
    $region50: #{tpu_custom_call.1} parent=1 // pred_check
      _
    $region51: #{tpu_custom_call.1} parent=1 // pred_check_branch
      %114 = sbr.rel (0) target = $region53
    $region52: #{tpu_custom_call.1} parent=1 // pred_region
      %115 = dma.done [#allocation12], 256
    $region53: #{tpu_custom_call.1} parent=1 // pred_fallthru
      _
    // Predicated region
    $region54: #{tpu_custom_call.1} parent=1 // pred_check
      _
    $region55: #{tpu_custom_call.1} parent=1 // pred_check_branch
      %117 = sbr.rel (0) target = $region57
    $region56: #{tpu_custom_call.1} parent=1 // pred_region
      %118 = dma.done [#allocation12], 16
    $region57: #{tpu_custom_call.1} parent=1 // pred_fallthru
      _
    %v120 = vld [vmem:[#allocation11] sm:$0xff]
    %v121 = vld [vmem:[#allocation11 + $0x8] sm:$0x3]
    %v122 = vld [vmem:[#allocation13] sm:$0x1]
    %v123 = vld [vmem:[#allocation2] sm:$0xf]
    %v124 = vld [vmem:[#allocation10] sm:$0x3]
    %v125 = vld [vmem:[#allocation10 + $0x2] sm:$0x3]
    %v126 = vld [vmem:[#allocation10 + $0x4] sm:$0x3]
    %v127 = vld [vmem:[#allocation10 + $0x6] sm:$0x3]
    %v132 = vrot.slane %v124, 6
    %v133 = vrot.slane %v125, 6
    %v134 = vrot.slane %v126, 6
    %v135 = vrot.slane %v127, 6
    %136 = vrot.lane.b32.xlu0 %v132, 127
    %v137 = vpop.permute.xlu0 %136
    %138 = vrot.lane.b32.xlu0 %v133, 127
    %v139 = vpop.permute.xlu0 %138
    %140 = vrot.lane.b32.xlu0 %v134, 127
    %v141 = vpop.permute.xlu0 %140
    %142 = vrot.lane.b32.xlu0 %v135, 127
    %v143 = vpop.permute.xlu0 %142
    %v148 = vrot.slane %v124, 4
    %v149 = vrot.slane %v125, 4
    %v150 = vrot.slane %v126, 4
    %v151 = vrot.slane %v127, 4
    %152 = vrot.lane.b32.xlu0 %v148, 126
    %v153 = vpop.permute.xlu0 %152
    %154 = vrot.lane.b32.xlu0 %v149, 126
    %v155 = vpop.permute.xlu0 %154
    %156 = vrot.lane.b32.xlu0 %v150, 126
    %v157 = vpop.permute.xlu0 %156
    %158 = vrot.lane.b32.xlu0 %v151, 126
    %v159 = vpop.permute.xlu0 %158
    %v164 = vrot.slane %v124, 2
    %v165 = vrot.slane %v125, 2
    %v166 = vrot.slane %v126, 2
    %v167 = vrot.slane %v127, 2
    %168 = vrot.lane.b32.xlu0 %v164, 125
    %v169 = vpop.permute.xlu0 %168
    %170 = vrot.lane.b32.xlu0 %v165, 125
    %v171 = vpop.permute.xlu0 %170
    %172 = vrot.lane.b32.xlu0 %v166, 125
    %v173 = vpop.permute.xlu0 %172
    %174 = vrot.lane.b32.xlu0 %v167, 125
    %v175 = vpop.permute.xlu0 %174
    %180 = vrot.lane.b32.xlu0 %v124, 124
    %v181 = vpop.permute.xlu0 %180
    %182 = vrot.lane.b32.xlu0 %v125, 124
    %v183 = vpop.permute.xlu0 %182
    %184 = vrot.lane.b32.xlu0 %v126, 124
    %v185 = vpop.permute.xlu0 %184
    %186 = vrot.lane.b32.xlu0 %v127, 124
    %v187 = vpop.permute.xlu0 %186
    %vm192 = vcmask 1041408
    %v193 = vsel %vm192, %v124, %v137
    %v194 = vsel %vm192, %v125, %v139
    %v195 = vsel %vm192, %v126, %v141
    %v196 = vsel %vm192, %v127, %v143
    %vm197 = vcmask 1043456
    %v198 = vsel %vm197, %v193, %v153
    %v199 = vsel %vm197, %v194, %v155
    %v200 = vsel %vm197, %v195, %v157
    %v201 = vsel %vm197, %v196, %v159
    %vm202 = vcmask 1045504
    %v203 = vsel %vm202, %v198, %v169
    %v204 = vsel %vm202, %v199, %v171
    %v205 = vsel %vm202, %v200, %v173
    %v206 = vsel %vm202, %v201, %v175
    %207 = vxpose.xlu0.b32.start [1/16] %v203, 128
    %208 = vxpose.xlu0.b32.cont [2/16] %v181, 128
    %209 = vxpose.xlu0.b32.cont [3/16] 0.0, 128
    %210 = vxpose.xlu0.b32.cont [4/16] 0.0, 128
    %211 = vxpose.xlu0.b32.cont [5/16] 0.0, 128
    %212 = vxpose.xlu0.b32.cont [6/16] 0.0, 128
    %213 = vxpose.xlu0.b32.cont [7/16] 0.0, 128
    %214 = vxpose.xlu0.b32.cont [8/16] 0.0, 128
    %215 = vxpose.xlu0.b32.cont [9/16] 0.0, 128
    %216 = vxpose.xlu0.b32.cont [10/16] 0.0, 128
    %217 = vxpose.xlu0.b32.cont [11/16] 0.0, 128
    %218 = vxpose.xlu0.b32.cont [12/16] 0.0, 128
    %219 = vxpose.xlu0.b32.cont [13/16] 0.0, 128
    %220 = vxpose.xlu0.b32.cont [14/16] 0.0, 128
    %221 = vxpose.xlu0.b32.cont [15/16] 0.0, 128
    %222 = vxpose.xlu0.b32.end [16/16] 0.0, 128
    %v223 = vpop.trf.xlu0
    %v224 = vpop.trf.xlu0
    %v225 = vpop.trf.xlu0
    %v226 = vpop.trf.xlu0
    %v227 = vpop.trf.xlu0
    %v228 = vpop.trf.xlu0
    %v229 = vpop.trf.xlu0
    %v230 = vpop.trf.xlu0
    %v231 = vpop.trf.xlu0
    %v232 = vpop.trf.xlu0
    %v233 = vpop.trf.xlu0
    %v234 = vpop.trf.xlu0
    %v235 = vpop.trf.xlu0
    %v236 = vpop.trf.xlu0
    %v237 = vpop.trf.xlu0
    %v238 = vpop.trf.xlu0
    %vm239 = vcmask 80896
    %v241 = vsel %vm239, %v223, 0
    %v244 = vsel %vm239, %v224, 0
    %v247 = vsel %vm192, %v121, 0
    %249 = vmatprep.subr.mxu0 0.0
    %250 = vmatpush1.msra.mxu0 %v120
    %251 = vmatprep.subr.mxu0 0.0
    %252 = vmatpush1.msra.mxu0 %v247
    %253 = vmatprep.subr.mxu0 0.0
    %254 = vmatpush1.msra.mxu0 0.0
    %255 = vmatprep.subr.mxu0 0.0
    %256 = vmatpush1.msra.mxu0 0.0
    %257 = vmatprep.subr.mxu0 0.0
    %258 = vmatpush1.msra.mxu0 0.0
    %259 = vmatprep.subr.mxu0 0.0
    %260 = vmatpush1.msra.mxu0 0.0
    %261 = vmatprep.subr.mxu0 0.0
    %262 = vmatpush1.msra.mxu0 0.0
    %263 = vmatprep.subr.mxu0 0.0
    %264 = vmatpush1.msra.mxu0 0.0
    %265 = vmatprep.subr.mxu0 0.0
    %266 = vmatpush1.msra.mxu0 0.0
    %267 = vmatprep.subr.mxu0 0.0
    %268 = vmatpush1.msra.mxu0 0.0
    %269 = vmatprep.subr.mxu0 0.0
    %270 = vmatpush1.msra.mxu0 0.0
    %271 = vmatprep.subr.mxu0 0.0
    %272 = vmatpush1.msra.mxu0 0.0
    %273 = vmatprep.subr.mxu0 0.0
    %274 = vmatpush1.msra.mxu0 0.0
    %275 = vmatprep.subr.mxu0 0.0
    %276 = vmatpush1.msra.mxu0 0.0
    %277 = vmatprep.subr.mxu0 0.0
    %278 = vmatpush1.msra.mxu0 0.0
    %279 = vmatprep.subr.mxu0 0.0
    %280 = vmatpush1.msra.mxu0 0.0
    %281 = vmatprep.subr.mxu0 0.0
    %282 = vmatpush1.msra.mxu0 0.0
    %283 = vmatprep.subr.mxu0 0.0
    %284 = vmatpush1.msra.mxu0 0.0
    %285 = vmatprep.subr.mxu0 0.0
    %286 = vmatpush1.msra.mxu0 0.0
    %287 = vmatprep.subr.mxu0 0.0
    %288 = vmatpush1.msra.mxu0 0.0
    %289 = vmatprep.subr.mxu0 0.0
    %290 = vmatpush1.msra.mxu0 0.0
    %291 = vmatprep.subr.mxu0 0.0
    %292 = vmatpush1.msra.mxu0 0.0
    %293 = vmatprep.subr.mxu0 0.0
    %294 = vmatpush1.msra.mxu0 0.0
    %295 = vmatprep.subr.mxu0 0.0
    %296 = vmatpush1.msra.mxu0 0.0
    %297 = vmatprep.subr.mxu0 0.0
    %298 = vmatpush1.msra.mxu0 0.0
    %299 = vmatprep.subr.mxu0 0.0
    %300 = vmatpush1.msra.mxu0 0.0
    %301 = vmatprep.subr.mxu0 0.0
    %302 = vmatpush1.msra.mxu0 0.0
    %303 = vmatprep.subr.mxu0 0.0
    %304 = vmatpush1.msra.mxu0 0.0
    %305 = vmatprep.subr.mxu0 0.0
    %306 = vmatpush1.msra.mxu0 0.0
    %307 = vmatprep.subr.mxu0 0.0
    %308 = vmatpush1.msra.mxu0 0.0
    %309 = vmatprep.subr.mxu0 0.0
    %310 = vmatpush1.msra.mxu0 0.0
    %311 = vmatprep.subr.mxu0 0.0
    %312 = vmatpush1.msra.mxu0 0.0
    %313 = vmatprep.mubr.f32.mxu0 0.0
    %314 = vmatmul.mubr.f32.gmra.mrb[0].mxu0 %v241
    %v315 = vpop.f32.mrb[0].mxu0
    %v316 = vadd.f32 0.0, %v315
    %v317 = vpop.f32.mrb[0].mxu0
    %318 = vmatprep.mubr.f32.mxu0 0.0
    %319 = vmatmul.mubr.f32.gmra.mrb[0].mxu0 %v244
    %v320 = vpop.f32.mrb[0].mxu0
    %v321 = vadd.f32 0.0, %v320
    %v322 = vpop.f32.mrb[0].mxu0
    %323 = vdwg.mxu0
    %v324 = vlaneseq
    %v325 = vshrl.u32 %v324, 7
    %v326 = vsub.s32 0, %v325
    %v327 = vrot.slane %v123, %v326
    %v328 = vadd.f32 %v327, %v316
    %v329 = vadd.f32 %v327, %v321
    %v330 = vld [vmem:[#allocation5] sm:$0xf]
    %v331 = vld [vmem:[#allocation5 + $0x4] sm:$0xf]
    %v332 = vunpack.c.l.bf16 %v330
    %v333 = vunpack.c.l.bf16 %v331
    %v334 = vadd.f32 %v328, %v332
    %v335 = vadd.f32 %v329, %v333
    %v336 = vtanh.pop %v334
    %v337 = vtanh.pop %v335
    %vm338 = vcmask 261120
    %v340 = vsel %vm338, %v122, 0
    %v343 = vsel %vm338, %v336, 0
    %v346 = vsel %vm338, %v337, 0
    %348 = vmatprep.subr.mxu0 0.0
    %349 = vmatpush1.xpose.msra.mxu0 %v343
    %350 = vmatprep.subr.mxu0 0.0
    %351 = vmatpush1.xpose.msra.mxu0 %v346
    %352 = vmatprep.subr.mxu0 0.0
    %353 = vmatpush1.xpose.msra.mxu0 0.0
    %354 = vmatprep.subr.mxu0 0.0
    %355 = vmatpush1.xpose.msra.mxu0 0.0
    %356 = vmatprep.subr.mxu0 0.0
    %357 = vmatpush1.xpose.msra.mxu0 0.0
    %358 = vmatprep.subr.mxu0 0.0
    %359 = vmatpush1.xpose.msra.mxu0 0.0
    %360 = vmatprep.subr.mxu0 0.0
    %361 = vmatpush1.xpose.msra.mxu0 0.0
    %362 = vmatprep.subr.mxu0 0.0
    %363 = vmatpush1.xpose.msra.mxu0 0.0
    %364 = vmatprep.subr.mxu0 0.0
    %365 = vmatpush1.xpose.msra.mxu0 0.0
    %366 = vmatprep.subr.mxu0 0.0
    %367 = vmatpush1.xpose.msra.mxu0 0.0
    %368 = vmatprep.subr.mxu0 0.0
    %369 = vmatpush1.xpose.msra.mxu0 0.0
    %370 = vmatprep.subr.mxu0 0.0
    %371 = vmatpush1.xpose.msra.mxu0 0.0
    %372 = vmatprep.subr.mxu0 0.0
    %373 = vmatpush1.xpose.msra.mxu0 0.0
    %374 = vmatprep.subr.mxu0 0.0
    %375 = vmatpush1.xpose.msra.mxu0 0.0
    %376 = vmatprep.subr.mxu0 0.0
    %377 = vmatpush1.xpose.msra.mxu0 0.0
    %378 = vmatprep.subr.mxu0 0.0
    %379 = vmatpush1.xpose.msra.mxu0 0.0
    %380 = vmatprep.subr.mxu0 0.0
    %381 = vmatpush1.xpose.msra.mxu0 0.0
    %382 = vmatprep.subr.mxu0 0.0
    %383 = vmatpush1.xpose.msra.mxu0 0.0
    %384 = vmatprep.subr.mxu0 0.0
    %385 = vmatpush1.xpose.msra.mxu0 0.0
    %386 = vmatprep.subr.mxu0 0.0
    %387 = vmatpush1.xpose.msra.mxu0 0.0
    %388 = vmatprep.subr.mxu0 0.0
    %389 = vmatpush1.xpose.msra.mxu0 0.0
    %390 = vmatprep.subr.mxu0 0.0
    %391 = vmatpush1.xpose.msra.mxu0 0.0
    %392 = vmatprep.subr.mxu0 0.0
    %393 = vmatpush1.xpose.msra.mxu0 0.0
    %394 = vmatprep.subr.mxu0 0.0
    %395 = vmatpush1.xpose.msra.mxu0 0.0
    %396 = vmatprep.subr.mxu0 0.0
    %397 = vmatpush1.xpose.msra.mxu0 0.0
    %398 = vmatprep.subr.mxu0 0.0
    %399 = vmatpush1.xpose.msra.mxu0 0.0
    %400 = vmatprep.subr.mxu0 0.0
    %401 = vmatpush1.xpose.msra.mxu0 0.0
    %402 = vmatprep.subr.mxu0 0.0
    %403 = vmatpush1.xpose.msra.mxu0 0.0
    %404 = vmatprep.subr.mxu0 0.0
    %405 = vmatpush1.xpose.msra.mxu0 0.0
    %406 = vmatprep.subr.mxu0 0.0
    %407 = vmatpush1.xpose.msra.mxu0 0.0
    %408 = vmatprep.subr.mxu0 0.0
    %409 = vmatpush1.xpose.msra.mxu0 0.0
    %410 = vmatprep.subr.mxu0 0.0
    %411 = vmatpush1.xpose.msra.mxu0 0.0
    %412 = vmatprep.mubr.f32.mxu0 0.0
    %413 = vmatmul.mubr.f32.gmra.mrb[0].mxu0 %v340
    %v414 = vpop.f32.mrb[0].mxu0
    %v415 = vadd.f32 0.0, %v414
    %v416 = vpop.f32.mrb[0].mxu0
    %417 = vdwg.mxu0
    %vm418 = vcmask 122880
    %419 = vst.msk [vmem:[#allocation15] sm:$0x1] %vm418, %v415
    %420 = vxpose.xlu0.b32.start [1/16] %v204, 128
    %421 = vxpose.xlu0.b32.cont [2/16] %v183, 128
    %422 = vxpose.xlu0.b32.cont [3/16] 0.0, 128
    %423 = vxpose.xlu0.b32.cont [4/16] 0.0, 128
    %424 = vxpose.xlu0.b32.cont [5/16] 0.0, 128
    %425 = vxpose.xlu0.b32.cont [6/16] 0.0, 128
    %426 = vxpose.xlu0.b32.cont [7/16] 0.0, 128
    %427 = vxpose.xlu0.b32.cont [8/16] 0.0, 128
    %428 = vxpose.xlu0.b32.cont [9/16] 0.0, 128
    %429 = vxpose.xlu0.b32.cont [10/16] 0.0, 128
    %430 = vxpose.xlu0.b32.cont [11/16] 0.0, 128
    %431 = vxpose.xlu0.b32.cont [12/16] 0.0, 128
    %432 = vxpose.xlu0.b32.cont [13/16] 0.0, 128
    %433 = vxpose.xlu0.b32.cont [14/16] 0.0, 128
    %434 = vxpose.xlu0.b32.cont [15/16] 0.0, 128
    %435 = vxpose.xlu0.b32.end [16/16] 0.0, 128
    %v436 = vpop.trf.xlu0
    %v437 = vpop.trf.xlu0
    %v438 = vpop.trf.xlu0
    %v439 = vpop.trf.xlu0
    %v440 = vpop.trf.xlu0
    %v441 = vpop.trf.xlu0
    %v442 = vpop.trf.xlu0
    %v443 = vpop.trf.xlu0
    %v444 = vpop.trf.xlu0
    %v445 = vpop.trf.xlu0
    %v446 = vpop.trf.xlu0
    %v447 = vpop.trf.xlu0
    %v448 = vpop.trf.xlu0
    %v449 = vpop.trf.xlu0
    %v450 = vpop.trf.xlu0
    %v451 = vpop.trf.xlu0
    %v453 = vsel %vm239, %v436, 0
    %v456 = vsel %vm239, %v437, 0
    %458 = vmatprep.subr.mxu0 0.0
    %459 = vmatpush1.msra.mxu0 %v120
    %460 = vmatprep.subr.mxu0 0.0
    %461 = vmatpush1.msra.mxu0 %v247
    %462 = vmatprep.subr.mxu0 0.0
    %463 = vmatpush1.msra.mxu0 0.0
    %464 = vmatprep.subr.mxu0 0.0
    %465 = vmatpush1.msra.mxu0 0.0
    %466 = vmatprep.subr.mxu0 0.0
    %467 = vmatpush1.msra.mxu0 0.0
    %468 = vmatprep.subr.mxu0 0.0
    %469 = vmatpush1.msra.mxu0 0.0
    %470 = vmatprep.subr.mxu0 0.0
    %471 = vmatpush1.msra.mxu0 0.0
    %472 = vmatprep.subr.mxu0 0.0
    %473 = vmatpush1.msra.mxu0 0.0
    %474 = vmatprep.subr.mxu0 0.0
    %475 = vmatpush1.msra.mxu0 0.0
    %476 = vmatprep.subr.mxu0 0.0
    %477 = vmatpush1.msra.mxu0 0.0
    %478 = vmatprep.subr.mxu0 0.0
    %479 = vmatpush1.msra.mxu0 0.0
    %480 = vmatprep.subr.mxu0 0.0
    %481 = vmatpush1.msra.mxu0 0.0
    %482 = vmatprep.subr.mxu0 0.0
    %483 = vmatpush1.msra.mxu0 0.0
    %484 = vmatprep.subr.mxu0 0.0
    %485 = vmatpush1.msra.mxu0 0.0
    %486 = vmatprep.subr.mxu0 0.0
    %487 = vmatpush1.msra.mxu0 0.0
    %488 = vmatprep.subr.mxu0 0.0
    %489 = vmatpush1.msra.mxu0 0.0
    %490 = vmatprep.subr.mxu0 0.0
    %491 = vmatpush1.msra.mxu0 0.0
    %492 = vmatprep.subr.mxu0 0.0
    %493 = vmatpush1.msra.mxu0 0.0
    %494 = vmatprep.subr.mxu0 0.0
    %495 = vmatpush1.msra.mxu0 0.0
    %496 = vmatprep.subr.mxu0 0.0
    %497 = vmatpush1.msra.mxu0 0.0
    %498 = vmatprep.subr.mxu0 0.0
    %499 = vmatpush1.msra.mxu0 0.0
    %500 = vmatprep.subr.mxu0 0.0
    %501 = vmatpush1.msra.mxu0 0.0
    %502 = vmatprep.subr.mxu0 0.0
    %503 = vmatpush1.msra.mxu0 0.0
    %504 = vmatprep.subr.mxu0 0.0
    %505 = vmatpush1.msra.mxu0 0.0
    %506 = vmatprep.subr.mxu0 0.0
    %507 = vmatpush1.msra.mxu0 0.0
    %508 = vmatprep.subr.mxu0 0.0
    %509 = vmatpush1.msra.mxu0 0.0
    %510 = vmatprep.subr.mxu0 0.0
    %511 = vmatpush1.msra.mxu0 0.0
    %512 = vmatprep.subr.mxu0 0.0
    %513 = vmatpush1.msra.mxu0 0.0
    %514 = vmatprep.subr.mxu0 0.0
    %515 = vmatpush1.msra.mxu0 0.0
    %516 = vmatprep.subr.mxu0 0.0
    %517 = vmatpush1.msra.mxu0 0.0
    %518 = vmatprep.subr.mxu0 0.0
    %519 = vmatpush1.msra.mxu0 0.0
    %520 = vmatprep.subr.mxu0 0.0
    %521 = vmatpush1.msra.mxu0 0.0
    %522 = vmatprep.mubr.f32.mxu0 0.0
    %523 = vmatmul.mubr.f32.gmra.mrb[0].mxu0 %v453
    %v524 = vpop.f32.mrb[0].mxu0
    %v525 = vadd.f32 0.0, %v524
    %v526 = vpop.f32.mrb[0].mxu0
    %527 = vmatprep.mubr.f32.mxu0 0.0
    %528 = vmatmul.mubr.f32.gmra.mrb[0].mxu0 %v456
    %v529 = vpop.f32.mrb[0].mxu0
    %v530 = vadd.f32 0.0, %v529
    %v531 = vpop.f32.mrb[0].mxu0
    %532 = vdwg.mxu0
    %v533 = vlaneseq
    %v534 = vshrl.u32 %v533, 7
    %v535 = vsub.s32 1, %v534
    %v536 = vrot.slane %v123, %v535
    %v537 = vadd.f32 %v536, %v525
    %v538 = vadd.f32 %v536, %v530
    %s539 = scalar_lea.vmem [#allocation5], 8
    %v540 = vld [vmem:[%s539] sm:$0xf]
    %v541 = vld [vmem:[%s539 + $0x4] sm:$0xf]
    %v542 = vunpack.c.l.bf16 %v540
    %v543 = vunpack.c.l.bf16 %v541
    %v544 = vadd.f32 %v537, %v542
    %v545 = vadd.f32 %v538, %v543
    %v546 = vtanh.pop %v544
    %v547 = vtanh.pop %v545
    %v549 = vsel %vm338, %v546, 0
    %v552 = vsel %vm338, %v547, 0
    %554 = vmatprep.subr.mxu0 0.0
    %555 = vmatpush1.xpose.msra.mxu0 %v549
    %556 = vmatprep.subr.mxu0 0.0
    %557 = vmatpush1.xpose.msra.mxu0 %v552
    %558 = vmatprep.subr.mxu0 0.0
    %559 = vmatpush1.xpose.msra.mxu0 0.0
    %560 = vmatprep.subr.mxu0 0.0
    %561 = vmatpush1.xpose.msra.mxu0 0.0
    %562 = vmatprep.subr.mxu0 0.0
    %563 = vmatpush1.xpose.msra.mxu0 0.0
    %564 = vmatprep.subr.mxu0 0.0
    %565 = vmatpush1.xpose.msra.mxu0 0.0
    %566 = vmatprep.subr.mxu0 0.0
    %567 = vmatpush1.xpose.msra.mxu0 0.0
    %568 = vmatprep.subr.mxu0 0.0
    %569 = vmatpush1.xpose.msra.mxu0 0.0
    %570 = vmatprep.subr.mxu0 0.0
    %571 = vmatpush1.xpose.msra.mxu0 0.0
    %572 = vmatprep.subr.mxu0 0.0
    %573 = vmatpush1.xpose.msra.mxu0 0.0
    %574 = vmatprep.subr.mxu0 0.0
    %575 = vmatpush1.xpose.msra.mxu0 0.0
    %576 = vmatprep.subr.mxu0 0.0
    %577 = vmatpush1.xpose.msra.mxu0 0.0
    %578 = vmatprep.subr.mxu0 0.0
    %579 = vmatpush1.xpose.msra.mxu0 0.0
    %580 = vmatprep.subr.mxu0 0.0
    %581 = vmatpush1.xpose.msra.mxu0 0.0
    %582 = vmatprep.subr.mxu0 0.0
    %583 = vmatpush1.xpose.msra.mxu0 0.0
    %584 = vmatprep.subr.mxu0 0.0
    %585 = vmatpush1.xpose.msra.mxu0 0.0
    %586 = vmatprep.subr.mxu0 0.0
    %587 = vmatpush1.xpose.msra.mxu0 0.0
    %588 = vmatprep.subr.mxu0 0.0
    %589 = vmatpush1.xpose.msra.mxu0 0.0
    %590 = vmatprep.subr.mxu0 0.0
    %591 = vmatpush1.xpose.msra.mxu0 0.0
    %592 = vmatprep.subr.mxu0 0.0
    %593 = vmatpush1.xpose.msra.mxu0 0.0
    %594 = vmatprep.subr.mxu0 0.0
    %595 = vmatpush1.xpose.msra.mxu0 0.0
    %596 = vmatprep.subr.mxu0 0.0
    %597 = vmatpush1.xpose.msra.mxu0 0.0
    %598 = vmatprep.subr.mxu0 0.0
    %599 = vmatpush1.xpose.msra.mxu0 0.0
    %600 = vmatprep.subr.mxu0 0.0
    %601 = vmatpush1.xpose.msra.mxu0 0.0
    %602 = vmatprep.subr.mxu0 0.0
    %603 = vmatpush1.xpose.msra.mxu0 0.0
    %604 = vmatprep.subr.mxu0 0.0
    %605 = vmatpush1.xpose.msra.mxu0 0.0
    %606 = vmatprep.subr.mxu0 0.0
    %607 = vmatpush1.xpose.msra.mxu0 0.0
    %608 = vmatprep.subr.mxu0 0.0
    %609 = vmatpush1.xpose.msra.mxu0 0.0
    %610 = vmatprep.subr.mxu0 0.0
    %611 = vmatpush1.xpose.msra.mxu0 0.0
    %612 = vmatprep.subr.mxu0 0.0
    %613 = vmatpush1.xpose.msra.mxu0 0.0
    %614 = vmatprep.subr.mxu0 0.0
    %615 = vmatpush1.xpose.msra.mxu0 0.0
    %616 = vmatprep.subr.mxu0 0.0
    %617 = vmatpush1.xpose.msra.mxu0 0.0
    %618 = vmatprep.mubr.f32.mxu0 0.0
    %619 = vmatmul.mubr.f32.gmra.mrb[0].mxu0 %v340
    %v620 = vpop.f32.mrb[0].mxu0
    %v621 = vadd.f32 0.0, %v620
    %v622 = vpop.f32.mrb[0].mxu0
    %623 = vdwg.mxu0
    %624 = vst.msk [vmem:[#allocation15 + $0x1] sm:$0x1] %vm418, %v621
    %625 = vxpose.xlu0.b32.start [1/16] %v205, 128
    %626 = vxpose.xlu0.b32.cont [2/16] %v185, 128
    %627 = vxpose.xlu0.b32.cont [3/16] 0.0, 128
    %628 = vxpose.xlu0.b32.cont [4/16] 0.0, 128
    %629 = vxpose.xlu0.b32.cont [5/16] 0.0, 128
    %630 = vxpose.xlu0.b32.cont [6/16] 0.0, 128
    %631 = vxpose.xlu0.b32.cont [7/16] 0.0, 128
    %632 = vxpose.xlu0.b32.cont [8/16] 0.0, 128
    %633 = vxpose.xlu0.b32.cont [9/16] 0.0, 128
    %634 = vxpose.xlu0.b32.cont [10/16] 0.0, 128
    %635 = vxpose.xlu0.b32.cont [11/16] 0.0, 128
    %636 = vxpose.xlu0.b32.cont [12/16] 0.0, 128
    %637 = vxpose.xlu0.b32.cont [13/16] 0.0, 128
    %638 = vxpose.xlu0.b32.cont [14/16] 0.0, 128
    %639 = vxpose.xlu0.b32.cont [15/16] 0.0, 128
    %640 = vxpose.xlu0.b32.end [16/16] 0.0, 128
    %v641 = vpop.trf.xlu0
    %v642 = vpop.trf.xlu0
    %v643 = vpop.trf.xlu0
    %v644 = vpop.trf.xlu0
    %v645 = vpop.trf.xlu0
    %v646 = vpop.trf.xlu0
    %v647 = vpop.trf.xlu0
    %v648 = vpop.trf.xlu0
    %v649 = vpop.trf.xlu0
    %v650 = vpop.trf.xlu0
    %v651 = vpop.trf.xlu0
    %v652 = vpop.trf.xlu0
    %v653 = vpop.trf.xlu0
    %v654 = vpop.trf.xlu0
    %v655 = vpop.trf.xlu0
    %v656 = vpop.trf.xlu0
    %v658 = vsel %vm239, %v641, 0
    %v661 = vsel %vm239, %v642, 0
    %663 = vmatprep.subr.mxu0 0.0
    %664 = vmatpush1.msra.mxu0 %v120
    %665 = vmatprep.subr.mxu0 0.0
    %666 = vmatpush1.msra.mxu0 %v247
    %667 = vmatprep.subr.mxu0 0.0
    %668 = vmatpush1.msra.mxu0 0.0
    %669 = vmatprep.subr.mxu0 0.0
    %670 = vmatpush1.msra.mxu0 0.0
    %671 = vmatprep.subr.mxu0 0.0
    %672 = vmatpush1.msra.mxu0 0.0
    %673 = vmatprep.subr.mxu0 0.0
    %674 = vmatpush1.msra.mxu0 0.0
    %675 = vmatprep.subr.mxu0 0.0
    %676 = vmatpush1.msra.mxu0 0.0
    %677 = vmatprep.subr.mxu0 0.0
    %678 = vmatpush1.msra.mxu0 0.0
    %679 = vmatprep.subr.mxu0 0.0
    %680 = vmatpush1.msra.mxu0 0.0
    %681 = vmatprep.subr.mxu0 0.0
    %682 = vmatpush1.msra.mxu0 0.0
    %683 = vmatprep.subr.mxu0 0.0
    %684 = vmatpush1.msra.mxu0 0.0
    %685 = vmatprep.subr.mxu0 0.0
    %686 = vmatpush1.msra.mxu0 0.0
    %687 = vmatprep.subr.mxu0 0.0
    %688 = vmatpush1.msra.mxu0 0.0
    %689 = vmatprep.subr.mxu0 0.0
    %690 = vmatpush1.msra.mxu0 0.0
    %691 = vmatprep.subr.mxu0 0.0
    %692 = vmatpush1.msra.mxu0 0.0
    %693 = vmatprep.subr.mxu0 0.0
    %694 = vmatpush1.msra.mxu0 0.0
    %695 = vmatprep.subr.mxu0 0.0
    %696 = vmatpush1.msra.mxu0 0.0
    %697 = vmatprep.subr.mxu0 0.0
    %698 = vmatpush1.msra.mxu0 0.0
    %699 = vmatprep.subr.mxu0 0.0
    %700 = vmatpush1.msra.mxu0 0.0
    %701 = vmatprep.subr.mxu0 0.0
    %702 = vmatpush1.msra.mxu0 0.0
    %703 = vmatprep.subr.mxu0 0.0
    %704 = vmatpush1.msra.mxu0 0.0
    %705 = vmatprep.subr.mxu0 0.0
    %706 = vmatpush1.msra.mxu0 0.0
    %707 = vmatprep.subr.mxu0 0.0
    %708 = vmatpush1.msra.mxu0 0.0
    %709 = vmatprep.subr.mxu0 0.0
    %710 = vmatpush1.msra.mxu0 0.0
    %711 = vmatprep.subr.mxu0 0.0
    %712 = vmatpush1.msra.mxu0 0.0
    %713 = vmatprep.subr.mxu0 0.0
    %714 = vmatpush1.msra.mxu0 0.0
    %715 = vmatprep.subr.mxu0 0.0
    %716 = vmatpush1.msra.mxu0 0.0
    %717 = vmatprep.subr.mxu0 0.0
    %718 = vmatpush1.msra.mxu0 0.0
    %719 = vmatprep.subr.mxu0 0.0
    %720 = vmatpush1.msra.mxu0 0.0
    %721 = vmatprep.subr.mxu0 0.0
    %722 = vmatpush1.msra.mxu0 0.0
    %723 = vmatprep.subr.mxu0 0.0
    %724 = vmatpush1.msra.mxu0 0.0
    %725 = vmatprep.subr.mxu0 0.0
    %726 = vmatpush1.msra.mxu0 0.0
    %727 = vmatprep.mubr.f32.mxu0 0.0
    %728 = vmatmul.mubr.f32.gmra.mrb[0].mxu0 %v658
    %v729 = vpop.f32.mrb[0].mxu0
    %v730 = vadd.f32 0.0, %v729
    %v731 = vpop.f32.mrb[0].mxu0
    %732 = vmatprep.mubr.f32.mxu0 0.0
    %733 = vmatmul.mubr.f32.gmra.mrb[0].mxu0 %v661
    %v734 = vpop.f32.mrb[0].mxu0
    %v735 = vadd.f32 0.0, %v734
    %v736 = vpop.f32.mrb[0].mxu0
    %737 = vdwg.mxu0
    %v738 = vlaneseq
    %v739 = vshrl.u32 %v738, 7
    %v740 = vsub.s32 2, %v739
    %v741 = vrot.slane %v123, %v740
    %v742 = vadd.f32 %v741, %v730
    %v743 = vadd.f32 %v741, %v735
    %s744 = scalar_lea.vmem [#allocation5], 16
    %v745 = vld [vmem:[%s744] sm:$0xf]
    %v746 = vld [vmem:[%s744 + $0x4] sm:$0xf]
    %v747 = vunpack.c.l.bf16 %v745
    %v748 = vunpack.c.l.bf16 %v746
    %v749 = vadd.f32 %v742, %v747
    %v750 = vadd.f32 %v743, %v748
    %v751 = vtanh.pop %v749
    %v752 = vtanh.pop %v750
    %v754 = vsel %vm338, %v751, 0
    %v757 = vsel %vm338, %v752, 0
    %759 = vmatprep.subr.mxu0 0.0
    %760 = vmatpush1.xpose.msra.mxu0 %v754
    %761 = vmatprep.subr.mxu0 0.0
    %762 = vmatpush1.xpose.msra.mxu0 %v757
    %763 = vmatprep.subr.mxu0 0.0
    %764 = vmatpush1.xpose.msra.mxu0 0.0
    %765 = vmatprep.subr.mxu0 0.0
    %766 = vmatpush1.xpose.msra.mxu0 0.0
    %767 = vmatprep.subr.mxu0 0.0
    %768 = vmatpush1.xpose.msra.mxu0 0.0
    %769 = vmatprep.subr.mxu0 0.0
    %770 = vmatpush1.xpose.msra.mxu0 0.0
    %771 = vmatprep.subr.mxu0 0.0
    %772 = vmatpush1.xpose.msra.mxu0 0.0
    %773 = vmatprep.subr.mxu0 0.0
    %774 = vmatpush1.xpose.msra.mxu0 0.0
    %775 = vmatprep.subr.mxu0 0.0
    %776 = vmatpush1.xpose.msra.mxu0 0.0
    %777 = vmatprep.subr.mxu0 0.0
    %778 = vmatpush1.xpose.msra.mxu0 0.0
    %779 = vmatprep.subr.mxu0 0.0
    %780 = vmatpush1.xpose.msra.mxu0 0.0
    %781 = vmatprep.subr.mxu0 0.0
    %782 = vmatpush1.xpose.msra.mxu0 0.0
    %783 = vmatprep.subr.mxu0 0.0
    %784 = vmatpush1.xpose.msra.mxu0 0.0
    %785 = vmatprep.subr.mxu0 0.0
    %786 = vmatpush1.xpose.msra.mxu0 0.0
    %787 = vmatprep.subr.mxu0 0.0
    %788 = vmatpush1.xpose.msra.mxu0 0.0
    %789 = vmatprep.subr.mxu0 0.0
    %790 = vmatpush1.xpose.msra.mxu0 0.0
    %791 = vmatprep.subr.mxu0 0.0
    %792 = vmatpush1.xpose.msra.mxu0 0.0
    %793 = vmatprep.subr.mxu0 0.0
    %794 = vmatpush1.xpose.msra.mxu0 0.0
    %795 = vmatprep.subr.mxu0 0.0
    %796 = vmatpush1.xpose.msra.mxu0 0.0
    %797 = vmatprep.subr.mxu0 0.0
    %798 = vmatpush1.xpose.msra.mxu0 0.0
    %799 = vmatprep.subr.mxu0 0.0
    %800 = vmatpush1.xpose.msra.mxu0 0.0
    %801 = vmatprep.subr.mxu0 0.0
    %802 = vmatpush1.xpose.msra.mxu0 0.0
    %803 = vmatprep.subr.mxu0 0.0
    %804 = vmatpush1.xpose.msra.mxu0 0.0
    %805 = vmatprep.subr.mxu0 0.0
    %806 = vmatpush1.xpose.msra.mxu0 0.0
    %807 = vmatprep.subr.mxu0 0.0
    %808 = vmatpush1.xpose.msra.mxu0 0.0
    %809 = vmatprep.subr.mxu0 0.0
    %810 = vmatpush1.xpose.msra.mxu0 0.0
    %811 = vmatprep.subr.mxu0 0.0
    %812 = vmatpush1.xpose.msra.mxu0 0.0
    %813 = vmatprep.subr.mxu0 0.0
    %814 = vmatpush1.xpose.msra.mxu0 0.0
    %815 = vmatprep.subr.mxu0 0.0
    %816 = vmatpush1.xpose.msra.mxu0 0.0
    %817 = vmatprep.subr.mxu0 0.0
    %818 = vmatpush1.xpose.msra.mxu0 0.0
    %819 = vmatprep.subr.mxu0 0.0
    %820 = vmatpush1.xpose.msra.mxu0 0.0
    %821 = vmatprep.subr.mxu0 0.0
    %822 = vmatpush1.xpose.msra.mxu0 0.0
    %823 = vmatprep.mubr.f32.mxu0 0.0
    %824 = vmatmul.mubr.f32.gmra.mrb[0].mxu0 %v340
    %v825 = vpop.f32.mrb[0].mxu0
    %v826 = vadd.f32 0.0, %v825
    %v827 = vpop.f32.mrb[0].mxu0
    %828 = vdwg.mxu0
    %829 = vst.msk [vmem:[#allocation15 + $0x2] sm:$0x1] %vm418, %v826
    %830 = vxpose.xlu0.b32.start [1/16] %v206, 128
    %831 = vxpose.xlu0.b32.cont [2/16] %v187, 128
    %832 = vxpose.xlu0.b32.cont [3/16] 0.0, 128
    %833 = vxpose.xlu0.b32.cont [4/16] 0.0, 128
    %834 = vxpose.xlu0.b32.cont [5/16] 0.0, 128
    %835 = vxpose.xlu0.b32.cont [6/16] 0.0, 128
    %836 = vxpose.xlu0.b32.cont [7/16] 0.0, 128
    %837 = vxpose.xlu0.b32.cont [8/16] 0.0, 128
    %838 = vxpose.xlu0.b32.cont [9/16] 0.0, 128
    %839 = vxpose.xlu0.b32.cont [10/16] 0.0, 128
    %840 = vxpose.xlu0.b32.cont [11/16] 0.0, 128
    %841 = vxpose.xlu0.b32.cont [12/16] 0.0, 128
    %842 = vxpose.xlu0.b32.cont [13/16] 0.0, 128
    %843 = vxpose.xlu0.b32.cont [14/16] 0.0, 128
    %844 = vxpose.xlu0.b32.cont [15/16] 0.0, 128
    %845 = vxpose.xlu0.b32.end [16/16] 0.0, 128
    %v846 = vpop.trf.xlu0
    %v847 = vpop.trf.xlu0
    %v848 = vpop.trf.xlu0
    %v849 = vpop.trf.xlu0
    %v850 = vpop.trf.xlu0
    %v851 = vpop.trf.xlu0
    %v852 = vpop.trf.xlu0
    %v853 = vpop.trf.xlu0
    %v854 = vpop.trf.xlu0
    %v855 = vpop.trf.xlu0
    %v856 = vpop.trf.xlu0
    %v857 = vpop.trf.xlu0
    %v858 = vpop.trf.xlu0
    %v859 = vpop.trf.xlu0
    %v860 = vpop.trf.xlu0
    %v861 = vpop.trf.xlu0
    %v863 = vsel %vm239, %v846, 0
    %v866 = vsel %vm239, %v847, 0
    %868 = vmatprep.subr.mxu0 0.0
    %869 = vmatpush1.msra.mxu0 %v120
    %870 = vmatprep.subr.mxu0 0.0
    %871 = vmatpush1.msra.mxu0 %v247
    %872 = vmatprep.subr.mxu0 0.0
    %873 = vmatpush1.msra.mxu0 0.0
    %874 = vmatprep.subr.mxu0 0.0
    %875 = vmatpush1.msra.mxu0 0.0
    %876 = vmatprep.subr.mxu0 0.0
    %877 = vmatpush1.msra.mxu0 0.0
    %878 = vmatprep.subr.mxu0 0.0
    %879 = vmatpush1.msra.mxu0 0.0
    %880 = vmatprep.subr.mxu0 0.0
    %881 = vmatpush1.msra.mxu0 0.0
    %882 = vmatprep.subr.mxu0 0.0
    %883 = vmatpush1.msra.mxu0 0.0
    %884 = vmatprep.subr.mxu0 0.0
    %885 = vmatpush1.msra.mxu0 0.0
    %886 = vmatprep.subr.mxu0 0.0
    %887 = vmatpush1.msra.mxu0 0.0
    %888 = vmatprep.subr.mxu0 0.0
    %889 = vmatpush1.msra.mxu0 0.0
    %890 = vmatprep.subr.mxu0 0.0
    %891 = vmatpush1.msra.mxu0 0.0
    %892 = vmatprep.subr.mxu0 0.0
    %893 = vmatpush1.msra.mxu0 0.0
    %894 = vmatprep.subr.mxu0 0.0
    %895 = vmatpush1.msra.mxu0 0.0
    %896 = vmatprep.subr.mxu0 0.0
    %897 = vmatpush1.msra.mxu0 0.0
    %898 = vmatprep.subr.mxu0 0.0
    %899 = vmatpush1.msra.mxu0 0.0
    %900 = vmatprep.subr.mxu0 0.0
    %901 = vmatpush1.msra.mxu0 0.0
    %902 = vmatprep.subr.mxu0 0.0
    %903 = vmatpush1.msra.mxu0 0.0
    %904 = vmatprep.subr.mxu0 0.0
    %905 = vmatpush1.msra.mxu0 0.0
    %906 = vmatprep.subr.mxu0 0.0
    %907 = vmatpush1.msra.mxu0 0.0
    %908 = vmatprep.subr.mxu0 0.0
    %909 = vmatpush1.msra.mxu0 0.0
    %910 = vmatprep.subr.mxu0 0.0
    %911 = vmatpush1.msra.mxu0 0.0
    %912 = vmatprep.subr.mxu0 0.0
    %913 = vmatpush1.msra.mxu0 0.0
    %914 = vmatprep.subr.mxu0 0.0
    %915 = vmatpush1.msra.mxu0 0.0
    %916 = vmatprep.subr.mxu0 0.0
    %917 = vmatpush1.msra.mxu0 0.0
    %918 = vmatprep.subr.mxu0 0.0
    %919 = vmatpush1.msra.mxu0 0.0
    %920 = vmatprep.subr.mxu0 0.0
    %921 = vmatpush1.msra.mxu0 0.0
    %922 = vmatprep.subr.mxu0 0.0
    %923 = vmatpush1.msra.mxu0 0.0
    %924 = vmatprep.subr.mxu0 0.0
    %925 = vmatpush1.msra.mxu0 0.0
    %926 = vmatprep.subr.mxu0 0.0
    %927 = vmatpush1.msra.mxu0 0.0
    %928 = vmatprep.subr.mxu0 0.0
    %929 = vmatpush1.msra.mxu0 0.0
    %930 = vmatprep.subr.mxu0 0.0
    %931 = vmatpush1.msra.mxu0 0.0
    %932 = vmatprep.mubr.f32.mxu0 0.0
    %933 = vmatmul.mubr.f32.gmra.mrb[0].mxu0 %v863
    %v934 = vpop.f32.mrb[0].mxu0
    %v935 = vadd.f32 0.0, %v934
    %v936 = vpop.f32.mrb[0].mxu0
    %937 = vmatprep.mubr.f32.mxu0 0.0
    %938 = vmatmul.mubr.f32.gmra.mrb[0].mxu0 %v866
    %v939 = vpop.f32.mrb[0].mxu0
    %v940 = vadd.f32 0.0, %v939
    %v941 = vpop.f32.mrb[0].mxu0
    %942 = vdwg.mxu0
    %v943 = vlaneseq
    %v944 = vshrl.u32 %v943, 7
    %v945 = vsub.s32 3, %v944
    %v946 = vrot.slane %v123, %v945
    %v947 = vadd.f32 %v946, %v935
    %v948 = vadd.f32 %v946, %v940
    %s949 = scalar_lea.vmem [#allocation5], 24
    %v950 = vld [vmem:[%s949] sm:$0xf]
    %v951 = vld [vmem:[%s949 + $0x4] sm:$0xf]
    %v952 = vunpack.c.l.bf16 %v950
    %v953 = vunpack.c.l.bf16 %v951
    %v954 = vadd.f32 %v947, %v952
    %v955 = vadd.f32 %v948, %v953
    %v956 = vtanh.pop %v954
    %v957 = vtanh.pop %v955
    %v959 = vsel %vm338, %v956, 0
    %v962 = vsel %vm338, %v957, 0
    %964 = vmatprep.subr.mxu0 0.0
    %965 = vmatpush1.xpose.msra.mxu0 %v959
    %966 = vmatprep.subr.mxu0 0.0
    %967 = vmatpush1.xpose.msra.mxu0 %v962
    %968 = vmatprep.subr.mxu0 0.0
    %969 = vmatpush1.xpose.msra.mxu0 0.0
    %970 = vmatprep.subr.mxu0 0.0
    %971 = vmatpush1.xpose.msra.mxu0 0.0
    %972 = vmatprep.subr.mxu0 0.0
    %973 = vmatpush1.xpose.msra.mxu0 0.0
    %974 = vmatprep.subr.mxu0 0.0
    %975 = vmatpush1.xpose.msra.mxu0 0.0
    %976 = vmatprep.subr.mxu0 0.0
    %977 = vmatpush1.xpose.msra.mxu0 0.0
    %978 = vmatprep.subr.mxu0 0.0
    %979 = vmatpush1.xpose.msra.mxu0 0.0
    %980 = vmatprep.subr.mxu0 0.0
    %981 = vmatpush1.xpose.msra.mxu0 0.0
    %982 = vmatprep.subr.mxu0 0.0
    %983 = vmatpush1.xpose.msra.mxu0 0.0
    %984 = vmatprep.subr.mxu0 0.0
    %985 = vmatpush1.xpose.msra.mxu0 0.0
    %986 = vmatprep.subr.mxu0 0.0
    %987 = vmatpush1.xpose.msra.mxu0 0.0
    %988 = vmatprep.subr.mxu0 0.0
    %989 = vmatpush1.xpose.msra.mxu0 0.0
    %990 = vmatprep.subr.mxu0 0.0
    %991 = vmatpush1.xpose.msra.mxu0 0.0
    %992 = vmatprep.subr.mxu0 0.0
    %993 = vmatpush1.xpose.msra.mxu0 0.0
    %994 = vmatprep.subr.mxu0 0.0
    %995 = vmatpush1.xpose.msra.mxu0 0.0
    %996 = vmatprep.subr.mxu0 0.0
    %997 = vmatpush1.xpose.msra.mxu0 0.0
    %998 = vmatprep.subr.mxu0 0.0
    %999 = vmatpush1.xpose.msra.mxu0 0.0
    %1000 = vmatprep.subr.mxu0 0.0
    %1001 = vmatpush1.xpose.msra.mxu0 0.0
    %1002 = vmatprep.subr.mxu0 0.0
    %1003 = vmatpush1.xpose.msra.mxu0 0.0
    %1004 = vmatprep.subr.mxu0 0.0
    %1005 = vmatpush1.xpose.msra.mxu0 0.0
    %1006 = vmatprep.subr.mxu0 0.0
    %1007 = vmatpush1.xpose.msra.mxu0 0.0
    %1008 = vmatprep.subr.mxu0 0.0
    %1009 = vmatpush1.xpose.msra.mxu0 0.0
    %1010 = vmatprep.subr.mxu0 0.0
    %1011 = vmatpush1.xpose.msra.mxu0 0.0
    %1012 = vmatprep.subr.mxu0 0.0
    %1013 = vmatpush1.xpose.msra.mxu0 0.0
    %1014 = vmatprep.subr.mxu0 0.0
    %1015 = vmatpush1.xpose.msra.mxu0 0.0
    %1016 = vmatprep.subr.mxu0 0.0
    %1017 = vmatpush1.xpose.msra.mxu0 0.0
    %1018 = vmatprep.subr.mxu0 0.0
    %1019 = vmatpush1.xpose.msra.mxu0 0.0
    %1020 = vmatprep.subr.mxu0 0.0
    %1021 = vmatpush1.xpose.msra.mxu0 0.0
    %1022 = vmatprep.subr.mxu0 0.0
    %1023 = vmatpush1.xpose.msra.mxu0 0.0
    %1024 = vmatprep.subr.mxu0 0.0
    %1025 = vmatpush1.xpose.msra.mxu0 0.0
    %1026 = vmatprep.subr.mxu0 0.0
    %1027 = vmatpush1.xpose.msra.mxu0 0.0
    %1028 = vmatprep.mubr.f32.mxu0 0.0
    %1029 = vmatmul.mubr.f32.gmra.mrb[0].mxu0 %v340
    %v1030 = vpop.f32.mrb[0].mxu0
    %v1031 = vadd.f32 0.0, %v1030
    %v1032 = vpop.f32.mrb[0].mxu0
    %1033 = vdwg.mxu0
    %1034 = vst.msk [vmem:[#allocation15 + $0x3] sm:$0x1] %vm418, %v1031
    %v1035 = vld [vmem:[#allocation15] sm:$0xf]
    %v1036 = vld [vmem:[#allocation8] sm:$0xf]
    %v1037 = vadd.f32 %v1035, %v1036
    %vm1038 = vcmask 125952
    %v1039 = vsel %vm1038, %v1037, -inf
    %1040 = vmax.xlane.f32.xlu0 %v1039
    %v1041 = vpop.xlane.xlu0 %1040
    %v1042 = vsub.f32 %v1037, %v1041
    %v1043 = vmul.f32 %v1042, 1.442695
    %v1044 = vpow.pop %v1043
    %v1045 = vsel %vm1038, %v1044, 0.0
    %1046 = vadd.xlane.f32.xlu0 %v1045
    %v1047 = vpop.xlane.xlu0 %1046
    %v1048 = vrcp.pop %v1047
    %v1049 = vmul.f32 %v1044, %v1048
    %1050 = vst.msk [vmem:[#allocation15] sm:$0xf] %vm1038, %v1049
    %v1051 = vpack.c.bf16 %v1049, %v1049
    %v1052 = vld [vmem:[#allocation7] sm:$0xf]
    %v1053 = vld [vmem:[#allocation7 + $0x4] sm:$0xf]
    %v1056 = vunpack.c.l.b16 %v1052
    %v1057 = vunpack.c.l.b16 %v1053
    %v1058 = vpack.c.b16 %v1057, %v1056
    %vm1060 = vcmask 130048
    %v1062 = vsel %vm1060, %v1051, 0
    %1064 = vmatprep.subr.bf16.mxu0 0
    %1065 = vmatpush1.bf16.msra.mxu0 %v1058
    %1066 = vmatprep.subr.bf16.mxu0 0
    %1067 = vmatpush1.bf16.msra.mxu0 0
    %1068 = vmatprep.subr.bf16.mxu0 0
    %1069 = vmatpush1.bf16.msra.mxu0 0
    %1070 = vmatprep.subr.bf16.mxu0 0
    %1071 = vmatpush1.bf16.msra.mxu0 0
    %1072 = vmatprep.subr.bf16.mxu0 0
    %1073 = vmatpush1.bf16.msra.mxu0 0
    %1074 = vmatprep.subr.bf16.mxu0 0
    %1075 = vmatpush1.bf16.msra.mxu0 0
    %1076 = vmatprep.subr.bf16.mxu0 0
    %1077 = vmatpush1.bf16.msra.mxu0 0
    %1078 = vmatprep.subr.bf16.mxu0 0
    %1079 = vmatpush1.bf16.msra.mxu0 0
    %1080 = vmatprep.subr.bf16.mxu0 0
    %1081 = vmatpush1.bf16.msra.mxu0 0
    %1082 = vmatprep.subr.bf16.mxu0 0
    %1083 = vmatpush1.bf16.msra.mxu0 0
    %1084 = vmatprep.subr.bf16.mxu0 0
    %1085 = vmatpush1.bf16.msra.mxu0 0
    %1086 = vmatprep.subr.bf16.mxu0 0
    %1087 = vmatpush1.bf16.msra.mxu0 0
    %1088 = vmatprep.subr.bf16.mxu0 0
    %1089 = vmatpush1.bf16.msra.mxu0 0
    %1090 = vmatprep.subr.bf16.mxu0 0
    %1091 = vmatpush1.bf16.msra.mxu0 0
    %1092 = vmatprep.subr.bf16.mxu0 0
    %1093 = vmatpush1.bf16.msra.mxu0 0
    %1094 = vmatprep.subr.bf16.mxu0 0
    %1095 = vmatpush1.bf16.msra.mxu0 0
    %1096 = vmatprep.mubr.bf16.mxu0 0
    %1097 = vmatmul.mubr.bf16.gmra.mrb[0].mxu0 %v1062
    %v1098 = vpop.f32.mrb[0].mxu0
    %v1099 = vadd.f32 0.0, %v1098
    %v1100 = vpop.f32.mrb[0].mxu0
    %v1101 = vpop.f32.mrb[0].mxu0
    %v1102 = vpop.f32.mrb[0].mxu0
    %1103 = vdwg.mxu0
    %vm1104 = vcmask 253952
    %1105 = vst.msk [vmem:[#allocation14] sm:$0x1] %vm1104, %v1099
    %s1106 = scalar_lea.vmem [#allocation7], 8
    %v1107 = vld [vmem:[%s1106] sm:$0xf]
    %v1108 = vld [vmem:[%s1106 + $0x4] sm:$0xf]
    %v1109 = vshrl.u32 %v1051, 16
    %v1113 = vunpack.c.l.b16 %v1107
    %v1114 = vunpack.c.l.b16 %v1108
    %v1115 = vpack.c.b16 %v1114, %v1113
    %v1118 = vsel %vm1060, %v1109, 0
    %1120 = vmatprep.subr.bf16.mxu0 0
    %1121 = vmatpush1.bf16.msra.mxu0 %v1115
    %1122 = vmatprep.subr.bf16.mxu0 0
    %1123 = vmatpush1.bf16.msra.mxu0 0
    %1124 = vmatprep.subr.bf16.mxu0 0
    %1125 = vmatpush1.bf16.msra.mxu0 0
    %1126 = vmatprep.subr.bf16.mxu0 0
    %1127 = vmatpush1.bf16.msra.mxu0 0
    %1128 = vmatprep.subr.bf16.mxu0 0
    %1129 = vmatpush1.bf16.msra.mxu0 0
    %1130 = vmatprep.subr.bf16.mxu0 0
    %1131 = vmatpush1.bf16.msra.mxu0 0
    %1132 = vmatprep.subr.bf16.mxu0 0
    %1133 = vmatpush1.bf16.msra.mxu0 0
    %1134 = vmatprep.subr.bf16.mxu0 0
    %1135 = vmatpush1.bf16.msra.mxu0 0
    %1136 = vmatprep.subr.bf16.mxu0 0
    %1137 = vmatpush1.bf16.msra.mxu0 0
    %1138 = vmatprep.subr.bf16.mxu0 0
    %1139 = vmatpush1.bf16.msra.mxu0 0
    %1140 = vmatprep.subr.bf16.mxu0 0
    %1141 = vmatpush1.bf16.msra.mxu0 0
    %1142 = vmatprep.subr.bf16.mxu0 0
    %1143 = vmatpush1.bf16.msra.mxu0 0
    %1144 = vmatprep.subr.bf16.mxu0 0
    %1145 = vmatpush1.bf16.msra.mxu0 0
    %1146 = vmatprep.subr.bf16.mxu0 0
    %1147 = vmatpush1.bf16.msra.mxu0 0
    %1148 = vmatprep.subr.bf16.mxu0 0
    %1149 = vmatpush1.bf16.msra.mxu0 0
    %1150 = vmatprep.subr.bf16.mxu0 0
    %1151 = vmatpush1.bf16.msra.mxu0 0
    %1152 = vmatprep.mubr.bf16.mxu0 0
    %1153 = vmatmul.mubr.bf16.gmra.mrb[0].mxu0 %v1118
    %v1154 = vpop.f32.mrb[0].mxu0
    %v1155 = vadd.f32 0.0, %v1154
    %v1156 = vpop.f32.mrb[0].mxu0
    %v1157 = vpop.f32.mrb[0].mxu0
    %v1158 = vpop.f32.mrb[0].mxu0
    %1159 = vdwg.mxu0
    %1160 = vst.msk [vmem:[#allocation14 + $0x1] sm:$0x1] %vm1104, %v1155
    %s1161 = scalar_lea.vmem [#allocation7], 16
    %v1162 = vld [vmem:[%s1161] sm:$0xf]
    %v1163 = vld [vmem:[%s1161 + $0x4] sm:$0xf]
    %v1165 = vrot.slane %v1051, 1
    %v1168 = vunpack.c.l.b16 %v1162
    %v1169 = vunpack.c.l.b16 %v1163
    %v1170 = vpack.c.b16 %v1169, %v1168
    %v1173 = vsel %vm1060, %v1165, 0
    %1175 = vmatprep.subr.bf16.mxu0 0
    %1176 = vmatpush1.bf16.msra.mxu0 %v1170
    %1177 = vmatprep.subr.bf16.mxu0 0
    %1178 = vmatpush1.bf16.msra.mxu0 0
    %1179 = vmatprep.subr.bf16.mxu0 0
    %1180 = vmatpush1.bf16.msra.mxu0 0
    %1181 = vmatprep.subr.bf16.mxu0 0
    %1182 = vmatpush1.bf16.msra.mxu0 0
    %1183 = vmatprep.subr.bf16.mxu0 0
    %1184 = vmatpush1.bf16.msra.mxu0 0
    %1185 = vmatprep.subr.bf16.mxu0 0
    %1186 = vmatpush1.bf16.msra.mxu0 0
    %1187 = vmatprep.subr.bf16.mxu0 0
    %1188 = vmatpush1.bf16.msra.mxu0 0
    %1189 = vmatprep.subr.bf16.mxu0 0
    %1190 = vmatpush1.bf16.msra.mxu0 0
    %1191 = vmatprep.subr.bf16.mxu0 0
    %1192 = vmatpush1.bf16.msra.mxu0 0
    %1193 = vmatprep.subr.bf16.mxu0 0
    %1194 = vmatpush1.bf16.msra.mxu0 0
    %1195 = vmatprep.subr.bf16.mxu0 0
    %1196 = vmatpush1.bf16.msra.mxu0 0
    %1197 = vmatprep.subr.bf16.mxu0 0
    %1198 = vmatpush1.bf16.msra.mxu0 0
    %1199 = vmatprep.subr.bf16.mxu0 0
    %1200 = vmatpush1.bf16.msra.mxu0 0
    %1201 = vmatprep.subr.bf16.mxu0 0
    %1202 = vmatpush1.bf16.msra.mxu0 0
    %1203 = vmatprep.subr.bf16.mxu0 0
    %1204 = vmatpush1.bf16.msra.mxu0 0
    %1205 = vmatprep.subr.bf16.mxu0 0
    %1206 = vmatpush1.bf16.msra.mxu0 0
    %1207 = vmatprep.mubr.bf16.mxu0 0
    %1208 = vmatmul.mubr.bf16.gmra.mrb[0].mxu0 %v1173
    %v1209 = vpop.f32.mrb[0].mxu0
    %v1210 = vadd.f32 0.0, %v1209
    %v1211 = vpop.f32.mrb[0].mxu0
    %v1212 = vpop.f32.mrb[0].mxu0
    %v1213 = vpop.f32.mrb[0].mxu0
    %1214 = vdwg.mxu0
    %1215 = vst.msk [vmem:[#allocation14 + $0x2] sm:$0x1] %vm1104, %v1210
    %s1216 = scalar_lea.vmem [#allocation7], 24
    %v1217 = vld [vmem:[%s1216] sm:$0xf]
    %v1218 = vld [vmem:[%s1216 + $0x4] sm:$0xf]
    %v1219 = vrot.slane %v1109, 1
    %v1222 = vunpack.c.l.b16 %v1217
    %v1223 = vunpack.c.l.b16 %v1218
    %v1224 = vpack.c.b16 %v1223, %v1222
    %v1227 = vsel %vm1060, %v1219, 0
    %1229 = vmatprep.subr.bf16.mxu0 0
    %1230 = vmatpush1.bf16.msra.mxu0 %v1224
    %1231 = vmatprep.subr.bf16.mxu0 0
    %1232 = vmatpush1.bf16.msra.mxu0 0
    %1233 = vmatprep.subr.bf16.mxu0 0
    %1234 = vmatpush1.bf16.msra.mxu0 0
    %1235 = vmatprep.subr.bf16.mxu0 0
    %1236 = vmatpush1.bf16.msra.mxu0 0
    %1237 = vmatprep.subr.bf16.mxu0 0
    %1238 = vmatpush1.bf16.msra.mxu0 0
    %1239 = vmatprep.subr.bf16.mxu0 0
    %1240 = vmatpush1.bf16.msra.mxu0 0
    %1241 = vmatprep.subr.bf16.mxu0 0
    %1242 = vmatpush1.bf16.msra.mxu0 0
    %1243 = vmatprep.subr.bf16.mxu0 0
    %1244 = vmatpush1.bf16.msra.mxu0 0
    %1245 = vmatprep.subr.bf16.mxu0 0
    %1246 = vmatpush1.bf16.msra.mxu0 0
    %1247 = vmatprep.subr.bf16.mxu0 0
    %1248 = vmatpush1.bf16.msra.mxu0 0
    %1249 = vmatprep.subr.bf16.mxu0 0
    %1250 = vmatpush1.bf16.msra.mxu0 0
    %1251 = vmatprep.subr.bf16.mxu0 0
    %1252 = vmatpush1.bf16.msra.mxu0 0
    %1253 = vmatprep.subr.bf16.mxu0 0
    %1254 = vmatpush1.bf16.msra.mxu0 0
    %1255 = vmatprep.subr.bf16.mxu0 0
    %1256 = vmatpush1.bf16.msra.mxu0 0
    %1257 = vmatprep.subr.bf16.mxu0 0
    %1258 = vmatpush1.bf16.msra.mxu0 0
    %1259 = vmatprep.subr.bf16.mxu0 0
    %1260 = vmatpush1.bf16.msra.mxu0 0
    %1261 = vmatprep.mubr.bf16.mxu0 0
    %1262 = vmatmul.mubr.bf16.gmra.mrb[0].mxu0 %v1227
    %v1263 = vpop.f32.mrb[0].mxu0
    %v1264 = vadd.f32 0.0, %v1263
    %v1265 = vpop.f32.mrb[0].mxu0
    %v1266 = vpop.f32.mrb[0].mxu0
    %v1267 = vpop.f32.mrb[0].mxu0
    %1268 = vdwg.mxu0
    %1269 = vst.msk [vmem:[#allocation14 + $0x3] sm:$0x1] %vm1104, %v1264
    // Predicated region
    $region58: #{tpu_custom_call.1} parent=1 // pred_check
      _
    $region59: #{tpu_custom_call.1} parent=1 // pred_check_branch
      %1271 = sbr.rel (0) target = $region61
    $region60: #{tpu_custom_call.1} parent=1 // pred_region
      %s1273 = ssub.s32 64, 64
      %1274 = vsyncadd [#allocation4], %s1273
      %s1276 = sshll.u32 [#allocation14], 4
      %s1277 = int_to_ptr.vmem [resolvable:$true] %s1276
      %1279 = dma.vmem_to_hbm [thread:$0]  %s1277, 64, %s7, [#allocation4]
    $region61: #{tpu_custom_call.1} parent=1 // pred_fallthru
      _
    // Predicated region
    $region62: #{tpu_custom_call.1} parent=1 // pred_check
      _
    $region63: #{tpu_custom_call.1} parent=1 // pred_check_branch
      %1281 = sbr.rel (0) target = $region65
    $region64: #{tpu_custom_call.1} parent=1 // pred_region
      %s1283 = ssub.s32 64, 64
      %1284 = vsyncadd [#allocation16], %s1283
      %s1286 = sshll.u32 [#allocation15], 4
      %s1287 = int_to_ptr.vmem [resolvable:$true] %s1286
      %1289 = dma.vmem_to_hbm [thread:$0]  %s1287, 64, %s8, [#allocation16]
    $region65: #{tpu_custom_call.1} parent=1 // pred_fallthru
      _
    // Predicated region
    $region66: #{tpu_custom_call.1} parent=1 // pred_check
      _
    $region67: #{tpu_custom_call.1} parent=1 // pred_check_branch
      %1291 = sbr.rel (0) target = $region69
    $region68: #{tpu_custom_call.1} parent=1 // pred_region
      %1292 = dma.done [#allocation4], 64
    $region69: #{tpu_custom_call.1} parent=1 // pred_fallthru
      _
    // Predicated region
    $region70: #{tpu_custom_call.1} parent=1 // pred_check
      _
    $region71: #{tpu_custom_call.1} parent=1 // pred_check_branch
      %1294 = sbr.rel (0) target = $region73
    $region72: #{tpu_custom_call.1} parent=1 // pred_region
      %1295 = dma.done [#allocation16], 64
    $region73: #{tpu_custom_call.1} parent=1 // pred_fallthru
      _
    %1296 = vsyncpa [#allocation3], 1
    %1297 = vsyncpa [#allocation6], 1
    %1298 = vsyncpa [#allocation9], 1
    %1299 = vsyncpa [#allocation12], 1
    %1300 = vsyncpa [#allocation4], 1
    %1301 = vsyncpa [#allocation16], 1

</llo_original>
